<compile_context>
chip_gen: v7x
topology: tpu7x:2x2x1
jax: 0.10.0
libtpu: 0.0.40
codegen_flags: <defaults>
</compile_context>

<pallas_src>
import numpy as np
import jax
import jax.numpy as jnp
from jax.experimental import pallas as pl
from jax.experimental.pallas import tpu as pltpu


def bayes_linear_kernel(x_ref, wmu_ref, wvar_ref, bmu_ref, bvar_ref, eps_ref, o_ref):
    """One (batch-tile, N-tile) block of the Bayesian linear forward."""
    x = x_ref[...]                                          # (tm, K) f32
    cd = wmu_ref.dtype                                      # compute dtype (f32 or bf16)

    # mean path: x @ W_mu^T + b_mu
    out_mu = jnp.dot(x.astype(cd), wmu_ref[...],
                     preferred_element_type=jnp.float32) + bmu_ref[...]

    # variance path: (x**2) @ var(W)^T + var(b)
    x2 = (x * x).astype(cd)
    out_var = jnp.dot(x2, wvar_ref[...],
                      preferred_element_type=jnp.float32) + bvar_ref[...]

    # local reparameterization: out_mu + sqrt(out_var) * N(0,1)
    o_ref[...] = (out_mu + jnp.sqrt(out_var) * eps_ref[...]).astype(o_ref.dtype)


def _round_up(a, b):
    return ((a + b - 1) // b) * b


def prepare_params(weight_mu, weight_rho, bias_mu, bias_rho, *, compute_dtype=jnp.float32):
    """Hoisted parameter transforms — call once and reuse across forwards."""
    w_mu_t = weight_mu.T.astype(compute_dtype)              # (K, N)
    w_var_t = jnp.exp(2.0 * weight_rho).T.astype(compute_dtype)  # exp(rho)^2 == exp(2 rho)
    b_mu = bias_mu.reshape(1, -1).astype(jnp.float32)
    b_var = jnp.exp(2.0 * bias_rho).reshape(1, -1).astype(jnp.float32)
    return w_mu_t, w_var_t, b_mu, b_var


def bayes_linear_forward(x, w_mu_t, w_var_t, b_mu, b_var, eps,
                         *, tm_target=256, tn_target=512):
    """x: (B, K) f32; w_*_t: (K, N); b_*: (1, N) f32; eps: (B, N) ~ N(0,1)."""
    B, K = x.shape
    N = w_mu_t.shape[1]

    # Tile sizes: big MXU-friendly tiles, shrunk to the (padded) problem size.
    tm = min(tm_target, _round_up(B, 8))
    tn = min(tn_target, _round_up(N, 128))
    Bp = _round_up(B, tm)
    Np = _round_up(N, tn)

    pad_b = Bp - B
    pad_n = Np - N
    if pad_b:
        x = jnp.pad(x, ((0, pad_b), (0, 0)))
    if pad_n:
        w_mu_t = jnp.pad(w_mu_t, ((0, 0), (0, pad_n)))
        w_var_t = jnp.pad(w_var_t, ((0, 0), (0, pad_n)))
        b_mu = jnp.pad(b_mu, ((0, 0), (0, pad_n)))
        b_var = jnp.pad(b_var, ((0, 0), (0, pad_n)))
    if pad_b or pad_n:
        eps = jnp.pad(eps, ((0, pad_b), (0, pad_n)))

    num_b = pl.cdiv(Bp, tm)
    num_n = pl.cdiv(Np, tn)

    # Weights are resident (constant index_map) when N fits in one tile:
    # single-buffer them to halve their VMEM footprint. When tiled along N,
    # keep default double-buffering so weight DMA overlaps the MXU.
    w_spec_kwargs = {"pipeline_mode": pl.Buffered(1)} if num_n == 1 else {}

    out = pl.pallas_call(
        bayes_linear_kernel,
        out_shape=jax.ShapeDtypeStruct((Bp, Np), jnp.float32),
        grid_spec=pltpu.PrefetchScalarGridSpec(
            num_scalar_prefetch=0,
            # N-tiles outer, batch-tiles inner: each weight block is reused
            # across all batch tiles before moving to the next N block.
            grid=(num_n, num_b),
            in_specs=[
                pl.BlockSpec((tm, K), lambda ni, bi: (bi, 0)),                  # x tile
                pl.BlockSpec((K, tn), lambda ni, bi: (0, ni), **w_spec_kwargs),  # W_mu^T
                pl.BlockSpec((K, tn), lambda ni, bi: (0, ni), **w_spec_kwargs),  # var(W)^T
                pl.BlockSpec((1, tn), lambda ni, bi: (0, ni)),                  # b_mu
                pl.BlockSpec((1, tn), lambda ni, bi: (0, ni)),                  # var(b)
                pl.BlockSpec((tm, tn), lambda ni, bi: (bi, ni)),                # eps tile
            ],
            out_specs=pl.BlockSpec((tm, tn), lambda ni, bi: (bi, ni)),
        ),
        compiler_params=pltpu.CompilerParams(
            dimension_semantics=("parallel", "parallel"),
            vmem_limit_bytes=64 * 1024 * 1024,
        ),
    )(x, w_mu_t, w_var_t, b_mu, b_var, eps)

    if pad_b or pad_n:
        out = out[:B, :N]
    return out


def init_params(key, in_features, out_features):
    """Deterministic init mirroring normalModule.reset_parameters."""
    k_w, k_b = jax.random.split(key)
    fan_in = in_features
    # kaiming_uniform_(a=sqrt(5)) -> bound = sqrt(6 / ((1 + a^2) * fan_in)) = 1/sqrt(fan_in)
    bound = 1.0 / np.sqrt(fan_in)
    weight_mu = jax.random.uniform(
        k_w, (out_features, in_features), jnp.float32, -bound, bound)
    weight_rho = jnp.full((out_features, in_features), np.log(0.1), jnp.float32)
    bias_mu = jax.random.uniform(k_b, (out_features,), jnp.float32, -bound, bound)
    bias_rho = jnp.full((out_features,), np.log(0.1), jnp.float32)
    return weight_mu, weight_rho, bias_mu, bias_rho


if __name__ == "__main__":
    key = jax.random.PRNGKey(0)
    k_x, k_eps, k_p = jax.random.split(key, 3)

    B, K, N = 512, 128, 256        # batch, in_features, out_features
    prior_sig = 0.1                # only used by kl_loss, not by forward

    x = jax.random.normal(k_x, (B, K), jnp.float32)
    eps = jax.random.normal(k_eps, (B, N), jnp.float32)   # the .normal_(0,1) sample
    weight_mu, weight_rho, bias_mu, bias_rho = init_params(k_p, K, N)

    # Parameter transforms computed once (cacheable across forwards).
    # For v6e/v7x throughput, pass compute_dtype=jnp.bfloat16 here.
    w_mu_t, w_var_t, b_mu, b_var = prepare_params(
        weight_mu, weight_rho, bias_mu, bias_rho, compute_dtype=jnp.float32)

    out = bayes_linear_forward(x, w_mu_t, w_var_t, b_mu, b_var, eps)
    out = jax.block_until_ready(out)

    # Pure-JAX reference check of the same forward semantics.
    ref_mu = x @ weight_mu.T + bias_mu
    ref_var = (x ** 2) @ (jnp.exp(weight_rho) ** 2).T + jnp.exp(bias_rho) ** 2
    ref = ref_mu + jnp.sqrt(ref_var) * eps
    np.testing.assert_allclose(np.asarray(out), np.asarray(ref), rtol=1e-5, atol=1e-5)

    print("KERNEL_OK")
</pallas_src>

<mosaic_0001>
module attributes {stable_mosaic.version = 11 : i64} {
  func.func @bayes_linear_kernel(%arg0: i32, %arg1: i32, %arg2: memref<256x128xf32, #tpu.memory_space<vmem>>, %arg3: memref<128x256xf32, #tpu.memory_space<vmem>>, %arg4: memref<128x256xf32, #tpu.memory_space<vmem>>, %arg5: memref<1x256xf32, #tpu.memory_space<vmem>>, %arg6: memref<1x256xf32, #tpu.memory_space<vmem>>, %arg7: memref<256x256xf32, #tpu.memory_space<vmem>>, %arg8: memref<256x256xf32, #tpu.memory_space<vmem>>) attributes {dimension_semantics = [#tpu.dimension_semantics<parallel>, #tpu.dimension_semantics<parallel>], iteration_bounds = array<i64: 1, 2>, scalar_prefetch = 0 : i64, scratch_operands = 0 : i64, tpu.core_type = #tpu.core_type<tc>, window_params = [{transform_indices = @transform_0, window_bounds = array<i64: 256, 128>}, {pipeline_mode = #tpu.pipeline_mode<synchronous>, transform_indices = @transform_1, window_bounds = array<i64: 128, 256>}, {pipeline_mode = #tpu.pipeline_mode<synchronous>, transform_indices = @transform_2, window_bounds = array<i64: 128, 256>}, {transform_indices = @transform_3, window_bounds = array<i64: 1, 256>}, {transform_indices = @transform_4, window_bounds = array<i64: 1, 256>}, {transform_indices = @transform_5, window_bounds = array<i64: 256, 256>}, {transform_indices = @transform_6, window_bounds = array<i64: 256, 256>}]} {
    %c0 = arith.constant 0 : index
    %c0_0 = arith.constant 0 : index
    %0 = vector.load %arg2[%c0, %c0_0] : memref<256x128xf32, #tpu.memory_space<vmem>>, vector<256x128xf32>
    %c0_1 = arith.constant 0 : index
    %c0_2 = arith.constant 0 : index
    %1 = vector.load %arg3[%c0_1, %c0_2] : memref<128x256xf32, #tpu.memory_space<vmem>>, vector<128x256xf32>
    %cst = arith.constant dense<0.000000e+00> : vector<256x256xf32>
    %2 = tpu.matmul %0, %1, %cst {dimension_numbers = #tpu.dot_dimension_numbers<[1], [0], [0], [1], [0, 0, 1, 1], [], []>} : vector<256x128xf32>, vector<128x256xf32>, vector<256x256xf32> -> vector<256x256xf32>
    %c0_3 = arith.constant 0 : index
    %c0_4 = arith.constant 0 : index
    %3 = vector.load %arg5[%c0_3, %c0_4] : memref<1x256xf32, #tpu.memory_space<vmem>>, vector<1x256xf32>
    %4 = vector.broadcast %3 : vector<1x256xf32> to vector<256x256xf32>
    %5 = arith.addf %2, %4 : vector<256x256xf32>
    %6 = arith.mulf %0, %0 : vector<256x128xf32>
    %c0_5 = arith.constant 0 : index
    %c0_6 = arith.constant 0 : index
    %7 = vector.load %arg4[%c0_5, %c0_6] : memref<128x256xf32, #tpu.memory_space<vmem>>, vector<128x256xf32>
    %cst_7 = arith.constant dense<0.000000e+00> : vector<256x256xf32>
    %8 = tpu.matmul %6, %7, %cst_7 {dimension_numbers = #tpu.dot_dimension_numbers<[1], [0], [0], [1], [0, 0, 1, 1], [], []>} : vector<256x128xf32>, vector<128x256xf32>, vector<256x256xf32> -> vector<256x256xf32>
    %c0_8 = arith.constant 0 : index
    %c0_9 = arith.constant 0 : index
    %9 = vector.load %arg6[%c0_8, %c0_9] : memref<1x256xf32, #tpu.memory_space<vmem>>, vector<1x256xf32>
    %10 = vector.broadcast %9 : vector<1x256xf32> to vector<256x256xf32>
    %11 = arith.addf %8, %10 : vector<256x256xf32>
    %12 = math.sqrt %11 : vector<256x256xf32>
    %c0_10 = arith.constant 0 : index
    %c0_11 = arith.constant 0 : index
    %13 = vector.load %arg7[%c0_10, %c0_11] : memref<256x256xf32, #tpu.memory_space<vmem>>, vector<256x256xf32>
    %14 = arith.mulf %12, %13 : vector<256x256xf32>
    %15 = arith.addf %5, %14 : vector<256x256xf32>
    %c0_12 = arith.constant 0 : index
    %c0_13 = arith.constant 0 : index
    %16 = vector.load %arg8[%c0_12, %c0_13] : memref<256x256xf32, #tpu.memory_space<vmem>>, vector<256x256xf32>
    tpu.vector_store %arg8[%c0_12, %c0_13], %15 {strides = array<i32>} : memref<256x256xf32, #tpu.memory_space<vmem>>, vector<256x256xf32>,
    return
  }
  func.func @transform_0(%arg0: i32, %arg1: i32) -> (i32, i32) {
    %c0_i32 = arith.constant 0 : i32
    %c0_i32_0 = arith.constant 0 : i32
    return %arg1, %c0_i32 : i32, i32
  }
  func.func @transform_1(%arg0: i32, %arg1: i32) -> (i32, i32) {
    %c0_i32 = arith.constant 0 : i32
    %c0_i32_0 = arith.constant 0 : i32
    return %c0_i32, %arg0 : i32, i32
  }
  func.func @transform_2(%arg0: i32, %arg1: i32) -> (i32, i32) {
    %c0_i32 = arith.constant 0 : i32
    %c0_i32_0 = arith.constant 0 : i32
    return %c0_i32, %arg0 : i32, i32
  }
  func.func @transform_3(%arg0: i32, %arg1: i32) -> (i32, i32) {
    %c0_i32 = arith.constant 0 : i32
    %c0_i32_0 = arith.constant 0 : i32
    return %c0_i32, %arg0 : i32, i32
  }
  func.func @transform_4(%arg0: i32, %arg1: i32) -> (i32, i32) {
    %c0_i32 = arith.constant 0 : i32
    %c0_i32_0 = arith.constant 0 : i32
    return %c0_i32, %arg0 : i32, i32
  }
  func.func @transform_5(%arg0: i32, %arg1: i32) -> (i32, i32) {
    %c0_i32 = arith.constant 0 : i32
    return %arg1, %arg0 : i32, i32
  }
  func.func @transform_6(%arg0: i32, %arg1: i32) -> (i32, i32) {
    %c0_i32 = arith.constant 0 : i32
    return %arg1, %arg0 : i32, i32
  }
}

</mosaic_0001>

<llo_original>
// kernel: tpu_custom_call.1
$region0: #{tpu_custom_call.1}
  #allocation0 [shape = 'u32[]', space=smem, size = 0x4, offset = 0x4, fixed_abs, tag = 'smem constant byte address 0x4 - core index']
  #allocation1 [shape = 'u32[144,128]{1,0:T(1,128)}', space=vmem, size = 0x12000, scoped, tag = 'internal scratch']
  %s0 = inlined_call_operand.hbm [shape: f32[512,128], index: 0, kind: input, shape index: {}]
  %s1 = inlined_call_operand.hbm [shape: f32[128,256], index: 1, kind: input, shape index: {}]
  %s2 = inlined_call_operand.hbm [shape: f32[128,256], index: 2, kind: input, shape index: {}]
  %s3 = inlined_call_operand.hbm [shape: f32[1,256], index: 3, kind: input, shape index: {}]
  %s4 = inlined_call_operand.hbm [shape: f32[1,256], index: 4, kind: input, shape index: {}]
  %s5 = inlined_call_operand.hbm [shape: f32[512,256], index: 5, kind: input, shape index: {}]
  %s6 = inlined_call_operand.hbm [shape: f32[512,256], index: 6, kind: output, shape index: {}]
  %s7 = sld [smem:[#allocation0]]
  $region81: #{tpu_custom_call.1} parent=0
    _
  %s9 = ssub.s32 1, %s7
  %s10 = scalar_select 0, %s9, %s7
  $region1: #{tpu_custom_call.1} parent=0
    #allocation2 [shape = 'u8[262144]{0}', space=vmem, size = 0x40000, scoped, tag = 'input window, operand 0']
    #allocation3 [shape = 's32[2]{0}', space=sflag, size = 0x8, scoped, tag = 'scoped memory for tpu_custom_call.1']
    #allocation4 [shape = 's32[2]{0}', space=sflag, size = 0x8, scoped, tag = 'scoped memory for tpu_custom_call.1']
    #allocation5 [shape = 'u8[131072]{0}', space=vmem, size = 0x20000, scoped, tag = 'input window, operand 1, single buffered']
    #allocation6 [shape = 's32[1]{0}', space=sflag, size = 0x4, scoped, tag = 'scoped memory for tpu_custom_call.1']
    #allocation7 [shape = 'u8[131072]{0}', space=vmem, size = 0x20000, scoped, tag = 'input window, operand 2, single buffered']
    #allocation8 [shape = 'u8[1024]{0}', space=vmem, size = 0x400, scoped, tag = 'input window, operand 3, single buffered']
    #allocation9 [shape = 's32[1]{0}', space=sflag, size = 0x4, scoped, tag = 'scoped memory for tpu_custom_call.1']
    #allocation10 [shape = 'u8[1024]{0}', space=vmem, size = 0x400, scoped, tag = 'input window, operand 4, single buffered']
    #allocation11 [shape = 'u8[524288]{0}', space=vmem, size = 0x80000, scoped, tag = 'input window, operand 5']
    #allocation12 [shape = 's32[2]{0}', space=sflag, size = 0x8, scoped, tag = 'scoped memory for tpu_custom_call.1']
    #allocation13 [shape = 'u8[524288]{0}', space=vmem, size = 0x80000, scoped, tag = 'output window, operand 0']
    %11 = vsyncpa [#allocation3], 0
    %s12 = scalar_lea.sflag [#allocation3], 1
    %13 = vsyncpa %s12, 0
    %14 = vsyncpa [#allocation6], 0
    %15 = vsyncpa [#allocation9], 0
    %16 = vsyncpa [#allocation12], 0
    %s17 = scalar_lea.sflag [#allocation12], 1
    %18 = vsyncpa %s17, 0
    %19 = vsyncpa [#allocation4], 0
    %s20 = scalar_lea.sflag [#allocation4], 1
    %21 = vsyncpa %s20, 0
    loop: start=0, step=1, limit=4
    $region2: #{tpu_custom_call.1} parent=1 // loop_pre_header
      _
    $region3: #{tpu_custom_call.1} parent=1 // loop_header
      %s23 = sphi 0, %s27
      %p24 = scmp.ge.s32.totalorder %s23, 4
      %s30 = sphi 0, %s42
      %s31 = sphi 0, %s38
      %s32 = sphi 0, %s30
      %s33 = sphi 0, %s31
      %s34 = sphi 0, %s32
      %s35 = sphi 0, %s33
      %s45 = sphi 0, %s47
      %s48 = sphi 0, %s45
      %s49 = sphi 0, %s48
      %s65 = sphi 0, %s49
      %s71 = sphi 0, %s73
      %s74 = sphi 0, %s71
      %s75 = sphi 0, %s74
      %s91 = sphi 0, %s75
      %s97 = sphi 0, %s99
      %s100 = sphi 0, %s97
      %s101 = sphi 0, %s100
      %s117 = sphi 0, %s101
      %s123 = sphi 0, %s125
      %s126 = sphi 0, %s123
      %s127 = sphi 0, %s126
      %s143 = sphi 0, %s127
      %s149 = sphi 0, %s151
      %s152 = sphi 0, %s149
      %s153 = sphi 0, %s152
      %s169 = sphi 0, %s153
      %s177 = sphi 0, %s179
      %s180 = sphi 0, %s177
      %s181 = sphi 0, %s180
      %s197 = sphi 0, %s181
      %s205 = sphi 0, %s207
      %s208 = sphi 0, %s205
      %s209 = sphi 0, %s208
      %s225 = sphi 0, %s209
    $region4: #{tpu_custom_call.1} parent=1 // loop_header_branch
      %26 = sbr.rel (%p24) target = $region8
    $region5: #{tpu_custom_call.1} parent=1 // loop_body
      %s28 = ssub.s32 %s23, 1
      %s29 = ssub.s32 %s23, 2
      %s36 = sadd.s32 1, %s31
      %p37 = scmp.ge.s32.totalorder %s36, 2
      %s38 = scalar_select %p37, 0, %s36
      %s39 = sadd.s32 1, %s30
      %s40 = scalar_select %p37, %s39, %s30
      %p41 = scmp.ge.s32.totalorder %s40, 1
      %s42 = scalar_select %p41, 0, %s40
      %s43 = ssub.s32 %s31, %s38
      %p44 = scmp.eq.s32.totalorder %s43, 0
      %s46 = sadd.s32 %s45, 1
      %s47 = scalar_select %p44, %s45, %s46
      %p50 = pneg %p44
      %p51 = scmp.eq.s32.totalorder %s23, 1
      %p52 = por %p50, %p51
      %p53 = scmp.ne.s32.totalorder %s45, %s48
      %p54 = scmp.eq.s32.totalorder %s23, 0
      %p55 = por %p53, %p54
      %p56 = scmp.ne.s32.totalorder %s45, %s48
      %p57 = scmp.eq.s32.totalorder %s28, 1
      %p58 = por %p56, %p57
      %p59 = scmp.ne.s32.totalorder %s48, %s49
      %p60 = scmp.eq.s32.totalorder %s28, 0
      %p61 = por %p59, %p60
      %p62 = scmp.ne.s32.totalorder %s48, %s49
      %p63 = scmp.eq.s32.totalorder %s29, 1
      %p64 = por %p62, %p63
      %p66 = scmp.ne.s32.totalorder %s49, %s65
      %p67 = scmp.eq.s32.totalorder %s29, 0
      %p68 = por %p66, %p67
      %s69 = ssub.s32 %s30, %s42
      %p70 = scmp.eq.s32.totalorder %s69, 0
      %s72 = sadd.s32 %s71, 1
      %s73 = scalar_select %p70, %s71, %s72
      %p76 = pneg %p70
      %p77 = scmp.eq.s32.totalorder %s23, 1
      %p78 = por %p76, %p77
      %p79 = scmp.ne.s32.totalorder %s71, %s74
      %p80 = scmp.eq.s32.totalorder %s23, 0
      %p81 = por %p79, %p80
      %p82 = scmp.ne.s32.totalorder %s71, %s74
      %p83 = scmp.eq.s32.totalorder %s28, 1
      %p84 = por %p82, %p83
      %p85 = scmp.ne.s32.totalorder %s74, %s75
      %p86 = scmp.eq.s32.totalorder %s28, 0
      %p87 = por %p85, %p86
      %p88 = scmp.ne.s32.totalorder %s74, %s75
      %p89 = scmp.eq.s32.totalorder %s29, 1
      %p90 = por %p88, %p89
      %p92 = scmp.ne.s32.totalorder %s75, %s91
      %p93 = scmp.eq.s32.totalorder %s29, 0
      %p94 = por %p92, %p93
      %s95 = ssub.s32 %s30, %s42
      %p96 = scmp.eq.s32.totalorder %s95, 0
      %s98 = sadd.s32 %s97, 1
      %s99 = scalar_select %p96, %s97, %s98
      %p102 = pneg %p96
      %p103 = scmp.eq.s32.totalorder %s23, 1
      %p104 = por %p102, %p103
      %p105 = scmp.ne.s32.totalorder %s97, %s100
      %p106 = scmp.eq.s32.totalorder %s23, 0
      %p107 = por %p105, %p106
      %p108 = scmp.ne.s32.totalorder %s97, %s100
      %p109 = scmp.eq.s32.totalorder %s28, 1
      %p110 = por %p108, %p109
      %p111 = scmp.ne.s32.totalorder %s100, %s101
      %p112 = scmp.eq.s32.totalorder %s28, 0
      %p113 = por %p111, %p112
      %p114 = scmp.ne.s32.totalorder %s100, %s101
      %p115 = scmp.eq.s32.totalorder %s29, 1
      %p116 = por %p114, %p115
      %p118 = scmp.ne.s32.totalorder %s101, %s117
      %p119 = scmp.eq.s32.totalorder %s29, 0
      %p120 = por %p118, %p119
      %s121 = ssub.s32 %s30, %s42
      %p122 = scmp.eq.s32.totalorder %s121, 0
      %s124 = sadd.s32 %s123, 1
      %s125 = scalar_select %p122, %s123, %s124
      %p128 = pneg %p122
      %p129 = scmp.eq.s32.totalorder %s23, 1
      %p130 = por %p128, %p129
      %p131 = scmp.ne.s32.totalorder %s123, %s126
      %p132 = scmp.eq.s32.totalorder %s23, 0
      %p133 = por %p131, %p132
      %p134 = scmp.ne.s32.totalorder %s123, %s126
      %p135 = scmp.eq.s32.totalorder %s28, 1
      %p136 = por %p134, %p135
      %p137 = scmp.ne.s32.totalorder %s126, %s127
      %p138 = scmp.eq.s32.totalorder %s28, 0
      %p139 = por %p137, %p138
      %p140 = scmp.ne.s32.totalorder %s126, %s127
      %p141 = scmp.eq.s32.totalorder %s29, 1
      %p142 = por %p140, %p141
      %p144 = scmp.ne.s32.totalorder %s127, %s143
      %p145 = scmp.eq.s32.totalorder %s29, 0
      %p146 = por %p144, %p145
      %s147 = ssub.s32 %s30, %s42
      %p148 = scmp.eq.s32.totalorder %s147, 0
      %s150 = sadd.s32 %s149, 1
      %s151 = scalar_select %p148, %s149, %s150
      %p154 = pneg %p148
      %p155 = scmp.eq.s32.totalorder %s23, 1
      %p156 = por %p154, %p155
      %p157 = scmp.ne.s32.totalorder %s149, %s152
      %p158 = scmp.eq.s32.totalorder %s23, 0
      %p159 = por %p157, %p158
      %p160 = scmp.ne.s32.totalorder %s149, %s152
      %p161 = scmp.eq.s32.totalorder %s28, 1
      %p162 = por %p160, %p161
      %p163 = scmp.ne.s32.totalorder %s152, %s153
      %p164 = scmp.eq.s32.totalorder %s28, 0
      %p165 = por %p163, %p164
      %p166 = scmp.ne.s32.totalorder %s152, %s153
      %p167 = scmp.eq.s32.totalorder %s29, 1
      %p168 = por %p166, %p167
      %p170 = scmp.ne.s32.totalorder %s153, %s169
      %p171 = scmp.eq.s32.totalorder %s29, 0
      %p172 = por %p170, %p171
      %s173 = ssub.s32 %s31, %s38
      %s174 = ssub.s32 %s30, %s42
      %s175 = sor.u32 %s173, %s174
      %p176 = scmp.eq.s32.totalorder %s175, 0
      %s178 = sadd.s32 %s177, 1
      %s179 = scalar_select %p176, %s177, %s178
      %p182 = pneg %p176
      %p183 = scmp.eq.s32.totalorder %s23, 1
      %p184 = por %p182, %p183
      %p185 = scmp.ne.s32.totalorder %s177, %s180
      %p186 = scmp.eq.s32.totalorder %s23, 0
      %p187 = por %p185, %p186
      %p188 = scmp.ne.s32.totalorder %s177, %s180
      %p189 = scmp.eq.s32.totalorder %s28, 1
      %p190 = por %p188, %p189
      %p191 = scmp.ne.s32.totalorder %s180, %s181
      %p192 = scmp.eq.s32.totalorder %s28, 0
      %p193 = por %p191, %p192
      %p194 = scmp.ne.s32.totalorder %s180, %s181
      %p195 = scmp.eq.s32.totalorder %s29, 1
      %p196 = por %p194, %p195
      %p198 = scmp.ne.s32.totalorder %s181, %s197
      %p199 = scmp.eq.s32.totalorder %s29, 0
      %p200 = por %p198, %p199
      %s201 = ssub.s32 %s31, %s38
      %s202 = ssub.s32 %s30, %s42
      %s203 = sor.u32 %s201, %s202
      %p204 = scmp.eq.s32.totalorder %s203, 0
      %s206 = sadd.s32 %s205, 1
      %s207 = scalar_select %p204, %s205, %s206
      %p210 = pneg %p204
      %p211 = scmp.eq.s32.totalorder %s23, 1
      %p212 = por %p210, %p211
      %p213 = scmp.ne.s32.totalorder %s205, %s208
      %p214 = scmp.eq.s32.totalorder %s23, 0
      %p215 = por %p213, %p214
      %p216 = scmp.ne.s32.totalorder %s205, %s208
      %p217 = scmp.eq.s32.totalorder %s28, 1
      %p218 = por %p216, %p217
      %p219 = scmp.ne.s32.totalorder %s208, %s209
      %p220 = scmp.eq.s32.totalorder %s28, 0
      %p221 = por %p219, %p220
      %p222 = scmp.ne.s32.totalorder %s208, %s209
      %p223 = scmp.eq.s32.totalorder %s29, 1
      %p224 = por %p222, %p223
      %p226 = scmp.ne.s32.totalorder %s209, %s225
      %p227 = scmp.eq.s32.totalorder %s29, 0
      %p228 = por %p226, %p227
      %p229 = scmp.le.s32.totalorder 1, %s23
      %p230 = scmp.lt.s32.totalorder %s23, 3
      %p231 = pnand %p229, %p230
      %p232 = pneg %p231
      // Predicated region
      $region9: #{tpu_custom_call.1} parent=5 // pred_check
        _
      $region10: #{tpu_custom_call.1} parent=5 // pred_check_branch
        %234 = sbr.rel (%p231) target = $region12
      $region11: #{tpu_custom_call.1} parent=5 // pred_region
        %s235 = ssub.s32 %s23, 1
        // Predicated region
        $region13: #{tpu_custom_call.1} parent=11 // pred_check
          %p236 = pneg %p87
        $region14: #{tpu_custom_call.1} parent=11 // pred_check_branch
          %238 = sbr.rel (%p236) target = $region16
        $region15: #{tpu_custom_call.1} parent=11 // pred_region
          %s239 = smul.u32 2, %s32
          %s241 = ssub.s32 4096, 4096
          %242 = vsyncadd [#allocation6], %s241
          %s243 = smul.addr %s239, 128
          %s244 = scalar_lea.hbm %s1, %s243
          %s245 = sshll.u32 [#allocation5], 4
          %s246 = int_to_ptr.vmem [resolvable:$true] %s245
          %251 = dma.hbm_to_vmem [thread:$0]  %s244, 4096, %s246, [#allocation6], 256, 256, 16
        $region16: #{tpu_custom_call.1} parent=11 // pred_fallthru
          _
        // Predicated region
        $region17: #{tpu_custom_call.1} parent=11 // pred_check
          %p252 = pneg %p113
        $region18: #{tpu_custom_call.1} parent=11 // pred_check_branch
          %254 = sbr.rel (%p252) target = $region20
        $region19: #{tpu_custom_call.1} parent=11 // pred_region
          %s255 = smul.u32 2, %s32
          %s257 = ssub.s32 4096, 4096
          %258 = vsyncadd [#allocation6], %s257
          %s259 = smul.addr %s255, 128
          %s260 = scalar_lea.hbm %s2, %s259
          %s261 = sshll.u32 [#allocation7], 4
          %s262 = int_to_ptr.vmem [resolvable:$true] %s261
          %267 = dma.hbm_to_vmem [thread:$0]  %s260, 4096, %s262, [#allocation6], 256, 256, 16
        $region20: #{tpu_custom_call.1} parent=11 // pred_fallthru
          _
        // Predicated region
        $region21: #{tpu_custom_call.1} parent=11 // pred_check
          %p268 = pneg %p139
        $region22: #{tpu_custom_call.1} parent=11 // pred_check_branch
          %270 = sbr.rel (%p268) target = $region24
        $region23: #{tpu_custom_call.1} parent=11 // pred_region
          %s271 = smul.u32 2, %s32
          %s273 = ssub.s32 32, 32
          %274 = vsyncadd [#allocation9], %s273
          %s275 = smul.addr %s271, 16
          %s276 = scalar_lea.hbm %s3, %s275
          %s278 = sshll.u32 [#allocation8], 4
          %s279 = int_to_ptr.vmem [resolvable:$true] %s278
          %281 = dma.hbm_to_vmem [thread:$0]  %s276, 32, %s279, [#allocation9]
        $region24: #{tpu_custom_call.1} parent=11 // pred_fallthru
          _
        // Predicated region
        $region25: #{tpu_custom_call.1} parent=11 // pred_check
          %p282 = pneg %p165
        $region26: #{tpu_custom_call.1} parent=11 // pred_check_branch
          %284 = sbr.rel (%p282) target = $region28
        $region27: #{tpu_custom_call.1} parent=11 // pred_region
          %s285 = smul.u32 2, %s32
          %s287 = ssub.s32 32, 32
          %288 = vsyncadd [#allocation9], %s287
          %s289 = smul.addr %s285, 16
          %s290 = scalar_lea.hbm %s4, %s289
          %s292 = sshll.u32 [#allocation10], 4
          %s293 = int_to_ptr.vmem [resolvable:$true] %s292
          %295 = dma.hbm_to_vmem [thread:$0]  %s290, 32, %s293, [#allocation9]
        $region28: #{tpu_custom_call.1} parent=11 // pred_fallthru
          _
      $region12: #{tpu_custom_call.1} parent=5 // pred_fallthru
        _
      %p296 = scmp.lt.s32.totalorder %s23, 2
      // Predicated region
      $region29: #{tpu_custom_call.1} parent=5 // pred_check
        %p297 = pneg %p296
      $region30: #{tpu_custom_call.1} parent=5 // pred_check_branch
        %299 = sbr.rel (%p297) target = $region32
      $region31: #{tpu_custom_call.1} parent=5 // pred_region
        // Predicated region
        $region33: #{tpu_custom_call.1} parent=31 // pred_check
          %p300 = pneg %p55
        $region34: #{tpu_custom_call.1} parent=31 // pred_check_branch
          %302 = sbr.rel (%p300) target = $region36
        $region35: #{tpu_custom_call.1} parent=31 // pred_region
          %s303 = sand.u32 %s45, 1
          %s304 = scalar_lea.sflag [#allocation3], %s303
          %s305 = sand.u32 %s45, 1
          %s306 = smul.addr %s305, 256
          %s307 = scalar_lea.vmem [#allocation2], %s306
          %s308 = smul.u32 32, %s31
          %s310 = ssub.s32 4096, 4096
          %311 = vsyncadd %s304, %s310
          %s312 = smul.addr %s308, 128
          %s313 = scalar_lea.hbm %s0, %s312
          %s314 = sshll.u32 %s307, 4
          %s315 = int_to_ptr.vmem [resolvable:$true] %s314
          %320 = dma.hbm_to_vmem [thread:$0]  %s313, 4096, %s315, %s304, 128, 128, 8
        $region36: #{tpu_custom_call.1} parent=31 // pred_fallthru
          _
        // Predicated region
        $region37: #{tpu_custom_call.1} parent=31 // pred_check
          %p321 = pneg %p187
        $region38: #{tpu_custom_call.1} parent=31 // pred_check_branch
          %323 = sbr.rel (%p321) target = $region40
        $region39: #{tpu_custom_call.1} parent=31 // pred_region
          %s324 = sand.u32 %s177, 1
          %s325 = scalar_lea.sflag [#allocation12], %s324
          %s326 = sand.u32 %s177, 1
          %s327 = smul.addr %s326, 512
          %s328 = scalar_lea.vmem [#allocation11], %s327
          %s329 = smul.u32 32, %s31
          %s330 = smul.u32 2, %s30
          %s332 = ssub.s32 8192, 8192
          %333 = vsyncadd %s325, %s332
          %s334 = smul.addr %s329, 2
          %s335 = sadd.s32 %s330, %s334
          %s336 = smul.addr %s335, 128
          %s337 = scalar_lea.hbm %s5, %s336
          %s338 = sshll.u32 %s328, 4
          %s339 = int_to_ptr.vmem [resolvable:$true] %s338
          %344 = dma.hbm_to_vmem [thread:$0]  %s337, 8192, %s339, %s325, 256, 256, 16
        $region40: #{tpu_custom_call.1} parent=31 // pred_fallthru
          _
      $region32: #{tpu_custom_call.1} parent=5 // pred_fallthru
        _
      %p345 = scmp.le.s32.totalorder 1, %s23
      %p346 = scmp.lt.s32.totalorder %s23, 3
      %p347 = pnand %p345, %p346
      %p348 = pneg %p347
      // Predicated region
      $region41: #{tpu_custom_call.1} parent=5 // pred_check
        _
      $region42: #{tpu_custom_call.1} parent=5 // pred_check_branch
        %350 = sbr.rel (%p347) target = $region44
      $region43: #{tpu_custom_call.1} parent=5 // pred_region
        %s351 = ssub.s32 %s23, 1
        %s352 = sand.u32 %s48, 1
        %s353 = scalar_lea.sflag [#allocation3], %s352
        %s354 = sand.u32 %s48, 1
        %s355 = smul.addr %s354, 256
        %s356 = scalar_lea.vmem [#allocation2], %s355
        // Predicated region
        $region45: #{tpu_custom_call.1} parent=43 // pred_check
          %p357 = pneg %p61
        $region46: #{tpu_custom_call.1} parent=43 // pred_check_branch
          %359 = sbr.rel (%p357) target = $region48
        $region47: #{tpu_custom_call.1} parent=43 // pred_region
          %360 = dma.done %s353, 4096
        $region48: #{tpu_custom_call.1} parent=43 // pred_fallthru
          _
        // Predicated region
        $region49: #{tpu_custom_call.1} parent=43 // pred_check
          %p361 = pneg %p87
        $region50: #{tpu_custom_call.1} parent=43 // pred_check_branch
          %363 = sbr.rel (%p361) target = $region52
        $region51: #{tpu_custom_call.1} parent=43 // pred_region
          %364 = dma.done [#allocation6], 4096
        $region52: #{tpu_custom_call.1} parent=43 // pred_fallthru
          _
        // Predicated region
        $region53: #{tpu_custom_call.1} parent=43 // pred_check
          %p365 = pneg %p113
        $region54: #{tpu_custom_call.1} parent=43 // pred_check_branch
          %367 = sbr.rel (%p365) target = $region56
        $region55: #{tpu_custom_call.1} parent=43 // pred_region
          %368 = dma.done [#allocation6], 4096
        $region56: #{tpu_custom_call.1} parent=43 // pred_fallthru
          _
        // Predicated region
        $region57: #{tpu_custom_call.1} parent=43 // pred_check
          %p369 = pneg %p139
        $region58: #{tpu_custom_call.1} parent=43 // pred_check_branch
          %371 = sbr.rel (%p369) target = $region60
        $region59: #{tpu_custom_call.1} parent=43 // pred_region
          %372 = dma.done [#allocation9], 32
        $region60: #{tpu_custom_call.1} parent=43 // pred_fallthru
          _
        // Predicated region
        $region61: #{tpu_custom_call.1} parent=43 // pred_check
          %p373 = pneg %p165
        $region62: #{tpu_custom_call.1} parent=43 // pred_check_branch
          %375 = sbr.rel (%p373) target = $region64
        $region63: #{tpu_custom_call.1} parent=43 // pred_region
          %376 = dma.done [#allocation9], 32
        $region64: #{tpu_custom_call.1} parent=43 // pred_fallthru
          _
        %s377 = sand.u32 %s180, 1
        %s378 = scalar_lea.sflag [#allocation12], %s377
        %s379 = sand.u32 %s180, 1
        %s380 = smul.addr %s379, 512
        %s381 = scalar_lea.vmem [#allocation11], %s380
        // Predicated region
        $region65: #{tpu_custom_call.1} parent=43 // pred_check
          %p382 = pneg %p193
        $region66: #{tpu_custom_call.1} parent=43 // pred_check_branch
          %384 = sbr.rel (%p382) target = $region68
        $region67: #{tpu_custom_call.1} parent=43 // pred_region
          %385 = dma.done %s378, 8192
        $region68: #{tpu_custom_call.1} parent=43 // pred_fallthru
          _
        %s386 = sand.u32 %s48, 1
        %s387 = scalar_lea.sflag [#allocation3], %s386
        %s388 = sand.u32 %s48, 1
        %s389 = smul.addr %s388, 256
        %s390 = scalar_lea.vmem [#allocation2], %s389
        %p391 = pneg %p61
        %p392 = pneg %p58
        %p393 = pneg %p87
        %p394 = pneg %p84
        %p395 = pneg %p113
        %p396 = pneg %p110
        %p397 = pneg %p139
        %p398 = pneg %p136
        %p399 = pneg %p165
        %p400 = pneg %p162
        %s401 = sand.u32 %s180, 1
        %s402 = scalar_lea.sflag [#allocation12], %s401
        %s403 = sand.u32 %s180, 1
        %s404 = smul.addr %s403, 512
        %s405 = scalar_lea.vmem [#allocation11], %s404
        %p406 = pneg %p193
        %p407 = pneg %p190
        %p408 = pneg %p221
        %p409 = pneg %p218
        %s410 = sand.u32 %s208, 1
        %s411 = scalar_lea.sflag [#allocation4], %s410
        %s412 = sand.u32 %s208, 1
        %s413 = smul.addr %s412, 512
        %s414 = scalar_lea.vmem [#allocation13], %s413
        %s415 = smul.u32 32, %s33
        %s416 = smul.u32 2, %s32
        %s417 = smul.u32 2, %s32
        %s418 = smul.u32 2, %s32
        %s419 = smul.u32 2, %s32
        %s420 = smul.u32 32, %s33
        %s421 = smul.u32 2, %s32
        %s422 = smul.u32 32, %s33
        %s423 = smul.u32 2, %s32
        %v424 = vld [vmem:[%s356] sm:$0xff]
        %v425 = vld [vmem:[%s356 + $0x8] sm:$0xff]
        %v426 = vld [vmem:[%s356 + $0x10] sm:$0xff]
        %v427 = vld [vmem:[%s356 + $0x18] sm:$0xff]
        %v428 = vld [vmem:[%s356 + $0x20] sm:$0xff]
        %v429 = vld [vmem:[%s356 + $0x28] sm:$0xff]
        %v430 = vld [vmem:[%s356 + $0x30] sm:$0xff]
        %v431 = vld [vmem:[%s356 + $0x38] sm:$0xff]
        %v432 = vld [vmem:[%s356 + $0x40] sm:$0xff]
        %v433 = vld [vmem:[%s356 + $0x48] sm:$0xff]
        %v434 = vld [vmem:[%s356 + $0x50] sm:$0xff]
        %v435 = vld [vmem:[%s356 + $0x58] sm:$0xff]
        %v436 = vld [vmem:[%s356 + $0x60] sm:$0xff]
        %v437 = vld [vmem:[%s356 + $0x68] sm:$0xff]
        %v438 = vld [vmem:[%s356 + $0x70] sm:$0xff]
        %v439 = vld [vmem:[%s356 + $0x78] sm:$0xff]
        %v440 = vld [vmem:[%s356 + $0x80] sm:$0xff]
        %v441 = vld [vmem:[%s356 + $0x88] sm:$0xff]
        %v442 = vld [vmem:[%s356 + $0x90] sm:$0xff]
        %v443 = vld [vmem:[%s356 + $0x98] sm:$0xff]
        %v444 = vld [vmem:[%s356 + $0xa0] sm:$0xff]
        %v445 = vld [vmem:[%s356 + $0xa8] sm:$0xff]
        %v446 = vld [vmem:[%s356 + $0xb0] sm:$0xff]
        %v447 = vld [vmem:[%s356 + $0xb8] sm:$0xff]
        %v448 = vld [vmem:[%s356 + $0xc0] sm:$0xff]
        %v449 = vld [vmem:[%s356 + $0xc8] sm:$0xff]
        %v450 = vld [vmem:[%s356 + $0xd0] sm:$0xff]
        %v451 = vld [vmem:[%s356 + $0xd8] sm:$0xff]
        %v452 = vld [vmem:[%s356 + $0xe0] sm:$0xff]
        %v453 = vld [vmem:[%s356 + $0xe8] sm:$0xff]
        %v454 = vld [vmem:[%s356 + $0xf0] sm:$0xff]
        %v455 = vld [vmem:[%s356 + $0xf8] sm:$0xff]
        %v456 = vld [vmem:[#allocation5] sm:$0xff]
        %v457 = vld [vmem:[#allocation5 + $0x8] sm:$0xff]
        %v458 = vld [vmem:[#allocation5 + $0x10] sm:$0xff]
        %v459 = vld [vmem:[#allocation5 + $0x18] sm:$0xff]
        %v460 = vld [vmem:[#allocation5 + $0x20] sm:$0xff]
        %v461 = vld [vmem:[#allocation5 + $0x28] sm:$0xff]
        %v462 = vld [vmem:[#allocation5 + $0x30] sm:$0xff]
        %v463 = vld [vmem:[#allocation5 + $0x38] sm:$0xff]
        %v464 = vld [vmem:[#allocation5 + $0x40] sm:$0xff]
        %v465 = vld [vmem:[#allocation5 + $0x48] sm:$0xff]
        %v466 = vld [vmem:[#allocation5 + $0x50] sm:$0xff]
        %v467 = vld [vmem:[#allocation5 + $0x58] sm:$0xff]
        %v468 = vld [vmem:[#allocation5 + $0x60] sm:$0xff]
        %v469 = vld [vmem:[#allocation5 + $0x68] sm:$0xff]
        %v470 = vld [vmem:[#allocation5 + $0x70] sm:$0xff]
        %v471 = vld [vmem:[#allocation5 + $0x78] sm:$0xff]
        %v472 = vld [vmem:[#allocation5 + $0x80] sm:$0xff]
        %v473 = vld [vmem:[#allocation5 + $0x88] sm:$0xff]
        %v474 = vld [vmem:[#allocation5 + $0x90] sm:$0xff]
        %v475 = vld [vmem:[#allocation5 + $0x98] sm:$0xff]
        %v476 = vld [vmem:[#allocation5 + $0xa0] sm:$0xff]
        %v477 = vld [vmem:[#allocation5 + $0xa8] sm:$0xff]
        %v478 = vld [vmem:[#allocation5 + $0xb0] sm:$0xff]
        %v479 = vld [vmem:[#allocation5 + $0xb8] sm:$0xff]
        %v480 = vld [vmem:[#allocation5 + $0xc0] sm:$0xff]
        %v481 = vld [vmem:[#allocation5 + $0xc8] sm:$0xff]
        %v482 = vld [vmem:[#allocation5 + $0xd0] sm:$0xff]
        %v483 = vld [vmem:[#allocation5 + $0xd8] sm:$0xff]
        %v484 = vld [vmem:[#allocation5 + $0xe0] sm:$0xff]
        %v485 = vld [vmem:[#allocation5 + $0xe8] sm:$0xff]
        %v486 = vld [vmem:[#allocation5 + $0xf0] sm:$0xff]
        %v487 = vld [vmem:[#allocation5 + $0xf8] sm:$0xff]
        %v488 = vld [vmem:[#allocation8] sm:$0x3]
        %v490 = vlaneseq
        %v491 = vshrl.u32 %v490, 7
        %v492 = vsub.s32 0, %v491
        %v493 = vrot.slane %v488, %v492
        %v494 = vlaneseq
        %v495 = vshrl.u32 %v494, 7
        %v496 = vsub.s32 1, %v495
        %v497 = vrot.slane %v488, %v496
        %500 = vmatprep.subr.mxu0 %v457
        %501 = vmatpush1.msra.mxu0 %v456
        %502 = vmatprep.subr.mxu0 %v459
        %503 = vmatpush1.msra.mxu0 %v458
        %504 = vmatprep.subr.mxu0 %v461
        %505 = vmatpush1.msra.mxu0 %v460
        %506 = vmatprep.subr.mxu0 %v463
        %507 = vmatpush1.msra.mxu0 %v462
        %508 = vmatprep.subr.mxu0 %v465
        %509 = vmatpush1.msra.mxu0 %v464
        %510 = vmatprep.subr.mxu0 %v467
        %511 = vmatpush1.msra.mxu0 %v466
        %512 = vmatprep.subr.mxu0 %v469
        %513 = vmatpush1.msra.mxu0 %v468
        %514 = vmatprep.subr.mxu0 %v471
        %515 = vmatpush1.msra.mxu0 %v470
        %516 = vmatprep.subr.mxu0 %v473
        %517 = vmatpush1.msra.mxu0 %v472
        %518 = vmatprep.subr.mxu0 %v475
        %519 = vmatpush1.msra.mxu0 %v474
        %520 = vmatprep.subr.mxu0 %v477
        %521 = vmatpush1.msra.mxu0 %v476
        %522 = vmatprep.subr.mxu0 %v479
        %523 = vmatpush1.msra.mxu0 %v478
        %524 = vmatprep.subr.mxu0 %v481
        %525 = vmatpush1.msra.mxu0 %v480
        %526 = vmatprep.subr.mxu0 %v483
        %527 = vmatpush1.msra.mxu0 %v482
        %528 = vmatprep.subr.mxu0 %v485
        %529 = vmatpush1.msra.mxu0 %v484
        %530 = vmatprep.subr.mxu0 %v487
        %531 = vmatpush1.msra.mxu0 %v486
        %532 = vmatprep.subr.mxu0 0.0
        %533 = vmatpush1.msra.mxu0 0.0
        %534 = vmatprep.subr.mxu0 0.0
        %535 = vmatpush1.msra.mxu0 0.0
        %536 = vmatprep.subr.mxu0 0.0
        %537 = vmatpush1.msra.mxu0 0.0
        %538 = vmatprep.subr.mxu0 0.0
        %539 = vmatpush1.msra.mxu0 0.0
        %540 = vmatprep.subr.mxu0 0.0
        %541 = vmatpush1.msra.mxu0 0.0
        %542 = vmatprep.subr.mxu0 0.0
        %543 = vmatpush1.msra.mxu0 0.0
        %544 = vmatprep.subr.mxu0 0.0
        %545 = vmatpush1.msra.mxu0 0.0
        %546 = vmatprep.subr.mxu0 0.0
        %547 = vmatpush1.msra.mxu0 0.0
        %548 = vmatprep.subr.mxu0 0.0
        %549 = vmatpush1.msra.mxu0 0.0
        %550 = vmatprep.subr.mxu0 0.0
        %551 = vmatpush1.msra.mxu0 0.0
        %552 = vmatprep.subr.mxu0 0.0
        %553 = vmatpush1.msra.mxu0 0.0
        %554 = vmatprep.subr.mxu0 0.0
        %555 = vmatpush1.msra.mxu0 0.0
        %556 = vmatprep.subr.mxu0 0.0
        %557 = vmatpush1.msra.mxu0 0.0
        %558 = vmatprep.subr.mxu0 0.0
        %559 = vmatpush1.msra.mxu0 0.0
        %560 = vmatprep.subr.mxu0 0.0
        %561 = vmatpush1.msra.mxu0 0.0
        %562 = vmatprep.subr.mxu0 0.0
        %563 = vmatpush1.msra.mxu0 0.0
        %564 = vmatprep.mubr.f32.mxu0 0.0
        %565 = vmatmul.mubr.f32.gmra.mrb[0].mxu0 %v424
        %v566 = vpop.f32.mrb[0].mxu0
        %v567 = vadd.f32 %v493, %v566
        %v568 = vpop.f32.mrb[0].mxu0
        %v569 = vadd.f32 %v497, %v568
        %570 = vmatprep.mubr.f32.mxu0 0.0
        %571 = vmatmul.mubr.f32.gmra.mrb[0].mxu0 %v425
        %v572 = vpop.f32.mrb[0].mxu0
        %v573 = vadd.f32 %v493, %v572
        %v574 = vpop.f32.mrb[0].mxu0
        %v575 = vadd.f32 %v497, %v574
        %576 = vmatprep.mubr.f32.mxu0 0.0
        %577 = vmatmul.mubr.f32.gmra.mrb[0].mxu0 %v426
        %v578 = vpop.f32.mrb[0].mxu0
        %v579 = vadd.f32 %v493, %v578
        %v580 = vpop.f32.mrb[0].mxu0
        %v581 = vadd.f32 %v497, %v580
        %582 = vmatprep.mubr.f32.mxu0 0.0
        %583 = vmatmul.mubr.f32.gmra.mrb[0].mxu0 %v427
        %v584 = vpop.f32.mrb[0].mxu0
        %v585 = vadd.f32 %v493, %v584
        %v586 = vpop.f32.mrb[0].mxu0
        %v587 = vadd.f32 %v497, %v586
        %588 = vmatprep.mubr.f32.mxu0 0.0
        %589 = vmatmul.mubr.f32.gmra.mrb[0].mxu0 %v428
        %v590 = vpop.f32.mrb[0].mxu0
        %v591 = vadd.f32 %v493, %v590
        %v592 = vpop.f32.mrb[0].mxu0
        %v593 = vadd.f32 %v497, %v592
        %594 = vmatprep.mubr.f32.mxu0 0.0
        %595 = vmatmul.mubr.f32.gmra.mrb[0].mxu0 %v429
        %v596 = vpop.f32.mrb[0].mxu0
        %v597 = vadd.f32 %v493, %v596
        %v598 = vpop.f32.mrb[0].mxu0
        %v599 = vadd.f32 %v497, %v598
        %600 = vmatprep.mubr.f32.mxu0 0.0
        %601 = vmatmul.mubr.f32.gmra.mrb[0].mxu0 %v430
        %v602 = vpop.f32.mrb[0].mxu0
        %v603 = vadd.f32 %v493, %v602
        %v604 = vpop.f32.mrb[0].mxu0
        %v605 = vadd.f32 %v497, %v604
        %606 = vmatprep.mubr.f32.mxu0 0.0
        %607 = vmatmul.mubr.f32.gmra.mrb[0].mxu0 %v431
        %v608 = vpop.f32.mrb[0].mxu0
        %v609 = vadd.f32 %v493, %v608
        %v610 = vpop.f32.mrb[0].mxu0
        %v611 = vadd.f32 %v497, %v610
        %612 = vmatprep.mubr.f32.mxu0 0.0
        %613 = vmatmul.mubr.f32.gmra.mrb[0].mxu0 %v432
        %v614 = vpop.f32.mrb[0].mxu0
        %v615 = vadd.f32 %v493, %v614
        %v616 = vpop.f32.mrb[0].mxu0
        %v617 = vadd.f32 %v497, %v616
        %618 = vmatprep.mubr.f32.mxu0 0.0
        %619 = vmatmul.mubr.f32.gmra.mrb[0].mxu0 %v433
        %v620 = vpop.f32.mrb[0].mxu0
        %v621 = vadd.f32 %v493, %v620
        %v622 = vpop.f32.mrb[0].mxu0
        %v623 = vadd.f32 %v497, %v622
        %624 = vmatprep.mubr.f32.mxu0 0.0
        %625 = vmatmul.mubr.f32.gmra.mrb[0].mxu0 %v434
        %v626 = vpop.f32.mrb[0].mxu0
        %v627 = vadd.f32 %v493, %v626
        %v628 = vpop.f32.mrb[0].mxu0
        %v629 = vadd.f32 %v497, %v628
        %630 = vmatprep.mubr.f32.mxu0 0.0
        %631 = vmatmul.mubr.f32.gmra.mrb[0].mxu0 %v435
        %v632 = vpop.f32.mrb[0].mxu0
        %v633 = vadd.f32 %v493, %v632
        %v634 = vpop.f32.mrb[0].mxu0
        %v635 = vadd.f32 %v497, %v634
        %636 = vmatprep.mubr.f32.mxu0 0.0
        %637 = vmatmul.mubr.f32.gmra.mrb[0].mxu0 %v436
        %v638 = vpop.f32.mrb[0].mxu0
        %v639 = vadd.f32 %v493, %v638
        %v640 = vpop.f32.mrb[0].mxu0
        %v641 = vadd.f32 %v497, %v640
        %642 = vmatprep.mubr.f32.mxu0 0.0
        %643 = vmatmul.mubr.f32.gmra.mrb[0].mxu0 %v437
        %v644 = vpop.f32.mrb[0].mxu0
        %v645 = vadd.f32 %v493, %v644
        %v646 = vpop.f32.mrb[0].mxu0
        %v647 = vadd.f32 %v497, %v646
        %648 = vmatprep.mubr.f32.mxu0 0.0
        %649 = vmatmul.mubr.f32.gmra.mrb[0].mxu0 %v438
        %v650 = vpop.f32.mrb[0].mxu0
        %v651 = vadd.f32 %v493, %v650
        %v652 = vpop.f32.mrb[0].mxu0
        %v653 = vadd.f32 %v497, %v652
        %654 = vmatprep.mubr.f32.mxu0 0.0
        %655 = vmatmul.mubr.f32.gmra.mrb[0].mxu0 %v439
        %v656 = vpop.f32.mrb[0].mxu0
        %v657 = vadd.f32 %v493, %v656
        %v658 = vpop.f32.mrb[0].mxu0
        %v659 = vadd.f32 %v497, %v658
        %660 = vmatprep.mubr.f32.mxu0 0.0
        %661 = vmatmul.mubr.f32.gmra.mrb[0].mxu0 %v440
        %v662 = vpop.f32.mrb[0].mxu0
        %v663 = vadd.f32 %v493, %v662
        %v664 = vpop.f32.mrb[0].mxu0
        %v665 = vadd.f32 %v497, %v664
        %666 = vmatprep.mubr.f32.mxu0 0.0
        %667 = vmatmul.mubr.f32.gmra.mrb[0].mxu0 %v441
        %v668 = vpop.f32.mrb[0].mxu0
        %v669 = vadd.f32 %v493, %v668
        %v670 = vpop.f32.mrb[0].mxu0
        %v671 = vadd.f32 %v497, %v670
        %672 = vmatprep.mubr.f32.mxu0 0.0
        %673 = vmatmul.mubr.f32.gmra.mrb[0].mxu0 %v442
        %v674 = vpop.f32.mrb[0].mxu0
        %v675 = vadd.f32 %v493, %v674
        %v676 = vpop.f32.mrb[0].mxu0
        %v677 = vadd.f32 %v497, %v676
        %678 = vmatprep.mubr.f32.mxu0 0.0
        %679 = vmatmul.mubr.f32.gmra.mrb[0].mxu0 %v443
        %v680 = vpop.f32.mrb[0].mxu0
        %v681 = vadd.f32 %v493, %v680
        %v682 = vpop.f32.mrb[0].mxu0
        %v683 = vadd.f32 %v497, %v682
        %684 = vmatprep.mubr.f32.mxu0 0.0
        %685 = vmatmul.mubr.f32.gmra.mrb[0].mxu0 %v444
        %v686 = vpop.f32.mrb[0].mxu0
        %v687 = vadd.f32 %v493, %v686
        %v688 = vpop.f32.mrb[0].mxu0
        %v689 = vadd.f32 %v497, %v688
        %690 = vmatprep.mubr.f32.mxu0 0.0
        %691 = vmatmul.mubr.f32.gmra.mrb[0].mxu0 %v445
        %v692 = vpop.f32.mrb[0].mxu0
        %v693 = vadd.f32 %v493, %v692
        %v694 = vpop.f32.mrb[0].mxu0
        %v695 = vadd.f32 %v497, %v694
        %696 = vmatprep.mubr.f32.mxu0 0.0
        %697 = vmatmul.mubr.f32.gmra.mrb[0].mxu0 %v446
        %v698 = vpop.f32.mrb[0].mxu0
        %v699 = vadd.f32 %v493, %v698
        %v700 = vpop.f32.mrb[0].mxu0
        %v701 = vadd.f32 %v497, %v700
        %702 = vmatprep.mubr.f32.mxu0 0.0
        %703 = vmatmul.mubr.f32.gmra.mrb[0].mxu0 %v447
        %v704 = vpop.f32.mrb[0].mxu0
        %v705 = vadd.f32 %v493, %v704
        %v706 = vpop.f32.mrb[0].mxu0
        %v707 = vadd.f32 %v497, %v706
        %708 = vmatprep.mubr.f32.mxu0 0.0
        %709 = vmatmul.mubr.f32.gmra.mrb[0].mxu0 %v448
        %v710 = vpop.f32.mrb[0].mxu0
        %v711 = vadd.f32 %v493, %v710
        %v712 = vpop.f32.mrb[0].mxu0
        %v713 = vadd.f32 %v497, %v712
        %714 = vmatprep.mubr.f32.mxu0 0.0
        %715 = vmatmul.mubr.f32.gmra.mrb[0].mxu0 %v449
        %v716 = vpop.f32.mrb[0].mxu0
        %v717 = vadd.f32 %v493, %v716
        %v718 = vpop.f32.mrb[0].mxu0
        %v719 = vadd.f32 %v497, %v718
        %720 = vmatprep.mubr.f32.mxu0 0.0
        %721 = vmatmul.mubr.f32.gmra.mrb[0].mxu0 %v450
        %v722 = vpop.f32.mrb[0].mxu0
        %v723 = vadd.f32 %v493, %v722
        %v724 = vpop.f32.mrb[0].mxu0
        %v725 = vadd.f32 %v497, %v724
        %726 = vmatprep.mubr.f32.mxu0 0.0
        %727 = vmatmul.mubr.f32.gmra.mrb[0].mxu0 %v451
        %v728 = vpop.f32.mrb[0].mxu0
        %v729 = vadd.f32 %v493, %v728
        %v730 = vpop.f32.mrb[0].mxu0
        %v731 = vadd.f32 %v497, %v730
        %732 = vmatprep.mubr.f32.mxu0 0.0
        %733 = vmatmul.mubr.f32.gmra.mrb[0].mxu0 %v452
        %v734 = vpop.f32.mrb[0].mxu0
        %v735 = vadd.f32 %v493, %v734
        %v736 = vpop.f32.mrb[0].mxu0
        %v737 = vadd.f32 %v497, %v736
        %738 = vmatprep.mubr.f32.mxu0 0.0
        %739 = vmatmul.mubr.f32.gmra.mrb[0].mxu0 %v453
        %v740 = vpop.f32.mrb[0].mxu0
        %v741 = vadd.f32 %v493, %v740
        %v742 = vpop.f32.mrb[0].mxu0
        %v743 = vadd.f32 %v497, %v742
        %744 = vmatprep.mubr.f32.mxu0 0.0
        %745 = vmatmul.mubr.f32.gmra.mrb[0].mxu0 %v454
        %v746 = vpop.f32.mrb[0].mxu0
        %v747 = vadd.f32 %v493, %v746
        %v748 = vpop.f32.mrb[0].mxu0
        %v749 = vadd.f32 %v497, %v748
        %750 = vmatprep.mubr.f32.mxu0 0.0
        %751 = vmatmul.mubr.f32.gmra.mrb[0].mxu0 %v455
        %v752 = vpop.f32.mrb[0].mxu0
        %v753 = vadd.f32 %v493, %v752
        %v754 = vpop.f32.mrb[0].mxu0
        %v755 = vadd.f32 %v497, %v754
        %756 = vdwg.mxu0
        %v757 = vmul.f32 %v424, %v424
        %v758 = vmul.f32 %v425, %v425
        %v759 = vmul.f32 %v426, %v426
        %v760 = vmul.f32 %v427, %v427
        %v761 = vmul.f32 %v428, %v428
        %v762 = vmul.f32 %v429, %v429
        %v763 = vmul.f32 %v430, %v430
        %v764 = vmul.f32 %v431, %v431
        %v765 = vmul.f32 %v432, %v432
        %v766 = vmul.f32 %v433, %v433
        %v767 = vmul.f32 %v434, %v434
        %v768 = vmul.f32 %v435, %v435
        %v769 = vmul.f32 %v436, %v436
        %v770 = vmul.f32 %v437, %v437
        %v771 = vmul.f32 %v438, %v438
        %v772 = vmul.f32 %v439, %v439
        %v773 = vmul.f32 %v440, %v440
        %v774 = vmul.f32 %v441, %v441
        %v775 = vmul.f32 %v442, %v442
        %v776 = vmul.f32 %v443, %v443
        %v777 = vmul.f32 %v444, %v444
        %v778 = vmul.f32 %v445, %v445
        %v779 = vmul.f32 %v446, %v446
        %v780 = vmul.f32 %v447, %v447
        %v781 = vmul.f32 %v448, %v448
        %v782 = vmul.f32 %v449, %v449
        %v783 = vmul.f32 %v450, %v450
        %v784 = vmul.f32 %v451, %v451
        %v785 = vmul.f32 %v452, %v452
        %v786 = vmul.f32 %v453, %v453
        %v787 = vmul.f32 %v454, %v454
        %v788 = vmul.f32 %v455, %v455
        %v789 = vld [vmem:[#allocation7] sm:$0xff]
        %v790 = vld [vmem:[#allocation7 + $0x8] sm:$0xff]
        %v791 = vld [vmem:[#allocation7 + $0x10] sm:$0xff]
        %v792 = vld [vmem:[#allocation7 + $0x18] sm:$0xff]
        %v793 = vld [vmem:[#allocation7 + $0x20] sm:$0xff]
        %v794 = vld [vmem:[#allocation7 + $0x28] sm:$0xff]
        %v795 = vld [vmem:[#allocation7 + $0x30] sm:$0xff]
        %v796 = vld [vmem:[#allocation7 + $0x38] sm:$0xff]
        %v797 = vld [vmem:[#allocation7 + $0x40] sm:$0xff]
        %v798 = vld [vmem:[#allocation7 + $0x48] sm:$0xff]
        %v799 = vld [vmem:[#allocation7 + $0x50] sm:$0xff]
        %v800 = vld [vmem:[#allocation7 + $0x58] sm:$0xff]
        %v801 = vld [vmem:[#allocation7 + $0x60] sm:$0xff]
        %v802 = vld [vmem:[#allocation7 + $0x68] sm:$0xff]
        %v803 = vld [vmem:[#allocation7 + $0x70] sm:$0xff]
        %v804 = vld [vmem:[#allocation7 + $0x78] sm:$0xff]
        %v805 = vld [vmem:[#allocation7 + $0x80] sm:$0xff]
        %v806 = vld [vmem:[#allocation7 + $0x88] sm:$0xff]
        %v807 = vld [vmem:[#allocation7 + $0x90] sm:$0xff]
        %v808 = vld [vmem:[#allocation7 + $0x98] sm:$0xff]
        %v809 = vld [vmem:[#allocation7 + $0xa0] sm:$0xff]
        %v810 = vld [vmem:[#allocation7 + $0xa8] sm:$0xff]
        %v811 = vld [vmem:[#allocation7 + $0xb0] sm:$0xff]
        %v812 = vld [vmem:[#allocation7 + $0xb8] sm:$0xff]
        %v813 = vld [vmem:[#allocation7 + $0xc0] sm:$0xff]
        %v814 = vld [vmem:[#allocation7 + $0xc8] sm:$0xff]
        %v815 = vld [vmem:[#allocation7 + $0xd0] sm:$0xff]
        %v816 = vld [vmem:[#allocation7 + $0xd8] sm:$0xff]
        %v817 = vld [vmem:[#allocation7 + $0xe0] sm:$0xff]
        %v818 = vld [vmem:[#allocation7 + $0xe8] sm:$0xff]
        %v819 = vld [vmem:[#allocation7 + $0xf0] sm:$0xff]
        %v820 = vld [vmem:[#allocation7 + $0xf8] sm:$0xff]
        %v821 = vld [vmem:[#allocation10] sm:$0x3]
        %v823 = vlaneseq
        %v824 = vshrl.u32 %v823, 7
        %v825 = vsub.s32 0, %v824
        %v826 = vrot.slane %v821, %v825
        %v827 = vlaneseq
        %v828 = vshrl.u32 %v827, 7
        %v829 = vsub.s32 1, %v828
        %v830 = vrot.slane %v821, %v829
        %833 = vmatprep.subr.mxu0 %v790
        %834 = vmatpush1.msra.mxu0 %v789
        %835 = vmatprep.subr.mxu0 %v792
        %836 = vmatpush1.msra.mxu0 %v791
        %837 = vmatprep.subr.mxu0 %v794
        %838 = vmatpush1.msra.mxu0 %v793
        %839 = vmatprep.subr.mxu0 %v796
        %840 = vmatpush1.msra.mxu0 %v795
        %841 = vmatprep.subr.mxu0 %v798
        %842 = vmatpush1.msra.mxu0 %v797
        %843 = vmatprep.subr.mxu0 %v800
        %844 = vmatpush1.msra.mxu0 %v799
        %845 = vmatprep.subr.mxu0 %v802
        %846 = vmatpush1.msra.mxu0 %v801
        %847 = vmatprep.subr.mxu0 %v804
        %848 = vmatpush1.msra.mxu0 %v803
        %849 = vmatprep.subr.mxu0 %v806
        %850 = vmatpush1.msra.mxu0 %v805
        %851 = vmatprep.subr.mxu0 %v808
        %852 = vmatpush1.msra.mxu0 %v807
        %853 = vmatprep.subr.mxu0 %v810
        %854 = vmatpush1.msra.mxu0 %v809
        %855 = vmatprep.subr.mxu0 %v812
        %856 = vmatpush1.msra.mxu0 %v811
        %857 = vmatprep.subr.mxu0 %v814
        %858 = vmatpush1.msra.mxu0 %v813
        %859 = vmatprep.subr.mxu0 %v816
        %860 = vmatpush1.msra.mxu0 %v815
        %861 = vmatprep.subr.mxu0 %v818
        %862 = vmatpush1.msra.mxu0 %v817
        %863 = vmatprep.subr.mxu0 %v820
        %864 = vmatpush1.msra.mxu0 %v819
        %865 = vmatprep.subr.mxu0 0.0
        %866 = vmatpush1.msra.mxu0 0.0
        %867 = vmatprep.subr.mxu0 0.0
        %868 = vmatpush1.msra.mxu0 0.0
        %869 = vmatprep.subr.mxu0 0.0
        %870 = vmatpush1.msra.mxu0 0.0
        %871 = vmatprep.subr.mxu0 0.0
        %872 = vmatpush1.msra.mxu0 0.0
        %873 = vmatprep.subr.mxu0 0.0
        %874 = vmatpush1.msra.mxu0 0.0
        %875 = vmatprep.subr.mxu0 0.0
        %876 = vmatpush1.msra.mxu0 0.0
        %877 = vmatprep.subr.mxu0 0.0
        %878 = vmatpush1.msra.mxu0 0.0
        %879 = vmatprep.subr.mxu0 0.0
        %880 = vmatpush1.msra.mxu0 0.0
        %881 = vmatprep.subr.mxu0 0.0
        %882 = vmatpush1.msra.mxu0 0.0
        %883 = vmatprep.subr.mxu0 0.0
        %884 = vmatpush1.msra.mxu0 0.0
        %885 = vmatprep.subr.mxu0 0.0
        %886 = vmatpush1.msra.mxu0 0.0
        %887 = vmatprep.subr.mxu0 0.0
        %888 = vmatpush1.msra.mxu0 0.0
        %889 = vmatprep.subr.mxu0 0.0
        %890 = vmatpush1.msra.mxu0 0.0
        %891 = vmatprep.subr.mxu0 0.0
        %892 = vmatpush1.msra.mxu0 0.0
        %893 = vmatprep.subr.mxu0 0.0
        %894 = vmatpush1.msra.mxu0 0.0
        %895 = vmatprep.subr.mxu0 0.0
        %896 = vmatpush1.msra.mxu0 0.0
        %897 = vmatprep.mubr.f32.mxu0 0.0
        %898 = vmatmul.mubr.f32.gmra.mrb[0].mxu0 %v757
        %v899 = vpop.f32.mrb[0].mxu0
        %v900 = vadd.f32 %v826, %v899
        %v901 = vpop.f32.mrb[0].mxu0
        %v902 = vadd.f32 %v830, %v901
        %903 = vmatprep.mubr.f32.mxu0 0.0
        %904 = vmatmul.mubr.f32.gmra.mrb[0].mxu0 %v758
        %v905 = vpop.f32.mrb[0].mxu0
        %v906 = vadd.f32 %v826, %v905
        %v907 = vpop.f32.mrb[0].mxu0
        %v908 = vadd.f32 %v830, %v907
        %909 = vmatprep.mubr.f32.mxu0 0.0
        %910 = vmatmul.mubr.f32.gmra.mrb[0].mxu0 %v759
        %v911 = vpop.f32.mrb[0].mxu0
        %v912 = vadd.f32 %v826, %v911
        %v913 = vpop.f32.mrb[0].mxu0
        %v914 = vadd.f32 %v830, %v913
        %915 = vmatprep.mubr.f32.mxu0 0.0
        %916 = vmatmul.mubr.f32.gmra.mrb[0].mxu0 %v760
        %v917 = vpop.f32.mrb[0].mxu0
        %v918 = vadd.f32 %v826, %v917
        %v919 = vpop.f32.mrb[0].mxu0
        %v920 = vadd.f32 %v830, %v919
        %921 = vmatprep.mubr.f32.mxu0 0.0
        %922 = vmatmul.mubr.f32.gmra.mrb[0].mxu0 %v761
        %v923 = vpop.f32.mrb[0].mxu0
        %v924 = vadd.f32 %v826, %v923
        %v925 = vpop.f32.mrb[0].mxu0
        %v926 = vadd.f32 %v830, %v925
        %927 = vmatprep.mubr.f32.mxu0 0.0
        %928 = vmatmul.mubr.f32.gmra.mrb[0].mxu0 %v762
        %v929 = vpop.f32.mrb[0].mxu0
        %v930 = vadd.f32 %v826, %v929
        %v931 = vpop.f32.mrb[0].mxu0
        %v932 = vadd.f32 %v830, %v931
        %933 = vmatprep.mubr.f32.mxu0 0.0
        %934 = vmatmul.mubr.f32.gmra.mrb[0].mxu0 %v763
        %v935 = vpop.f32.mrb[0].mxu0
        %v936 = vadd.f32 %v826, %v935
        %v937 = vpop.f32.mrb[0].mxu0
        %v938 = vadd.f32 %v830, %v937
        %939 = vmatprep.mubr.f32.mxu0 0.0
        %940 = vmatmul.mubr.f32.gmra.mrb[0].mxu0 %v764
        %v941 = vpop.f32.mrb[0].mxu0
        %v942 = vadd.f32 %v826, %v941
        %v943 = vpop.f32.mrb[0].mxu0
        %v944 = vadd.f32 %v830, %v943
        %945 = vmatprep.mubr.f32.mxu0 0.0
        %946 = vmatmul.mubr.f32.gmra.mrb[0].mxu0 %v765
        %v947 = vpop.f32.mrb[0].mxu0
        %v948 = vadd.f32 %v826, %v947
        %v949 = vpop.f32.mrb[0].mxu0
        %v950 = vadd.f32 %v830, %v949
        %951 = vmatprep.mubr.f32.mxu0 0.0
        %952 = vmatmul.mubr.f32.gmra.mrb[0].mxu0 %v766
        %v953 = vpop.f32.mrb[0].mxu0
        %v954 = vadd.f32 %v826, %v953
        %v955 = vpop.f32.mrb[0].mxu0
        %v956 = vadd.f32 %v830, %v955
        %957 = vmatprep.mubr.f32.mxu0 0.0
        %958 = vmatmul.mubr.f32.gmra.mrb[0].mxu0 %v767
        %v959 = vpop.f32.mrb[0].mxu0
        %v960 = vadd.f32 %v826, %v959
        %v961 = vpop.f32.mrb[0].mxu0
        %v962 = vadd.f32 %v830, %v961
        %963 = vmatprep.mubr.f32.mxu0 0.0
        %964 = vmatmul.mubr.f32.gmra.mrb[0].mxu0 %v768
        %v965 = vpop.f32.mrb[0].mxu0
        %v966 = vadd.f32 %v826, %v965
        %v967 = vpop.f32.mrb[0].mxu0
        %v968 = vadd.f32 %v830, %v967
        %969 = vmatprep.mubr.f32.mxu0 0.0
        %970 = vmatmul.mubr.f32.gmra.mrb[0].mxu0 %v769
        %v971 = vpop.f32.mrb[0].mxu0
        %v972 = vadd.f32 %v826, %v971
        %v973 = vpop.f32.mrb[0].mxu0
        %v974 = vadd.f32 %v830, %v973
        %975 = vmatprep.mubr.f32.mxu0 0.0
        %976 = vmatmul.mubr.f32.gmra.mrb[0].mxu0 %v770
        %v977 = vpop.f32.mrb[0].mxu0
        %v978 = vadd.f32 %v826, %v977
        %v979 = vpop.f32.mrb[0].mxu0
        %v980 = vadd.f32 %v830, %v979
        %981 = vmatprep.mubr.f32.mxu0 0.0
        %982 = vmatmul.mubr.f32.gmra.mrb[0].mxu0 %v771
        %v983 = vpop.f32.mrb[0].mxu0
        %v984 = vadd.f32 %v826, %v983
        %v985 = vpop.f32.mrb[0].mxu0
        %v986 = vadd.f32 %v830, %v985
        %987 = vmatprep.mubr.f32.mxu0 0.0
        %988 = vmatmul.mubr.f32.gmra.mrb[0].mxu0 %v772
        %v989 = vpop.f32.mrb[0].mxu0
        %v990 = vadd.f32 %v826, %v989
        %v991 = vpop.f32.mrb[0].mxu0
        %v992 = vadd.f32 %v830, %v991
        %993 = vmatprep.mubr.f32.mxu0 0.0
        %994 = vmatmul.mubr.f32.gmra.mrb[0].mxu0 %v773
        %v995 = vpop.f32.mrb[0].mxu0
        %v996 = vadd.f32 %v826, %v995
        %v997 = vpop.f32.mrb[0].mxu0
        %v998 = vadd.f32 %v830, %v997
        %999 = vmatprep.mubr.f32.mxu0 0.0
        %1000 = vmatmul.mubr.f32.gmra.mrb[0].mxu0 %v774
        %v1001 = vpop.f32.mrb[0].mxu0
        %v1002 = vadd.f32 %v826, %v1001
        %v1003 = vpop.f32.mrb[0].mxu0
        %v1004 = vadd.f32 %v830, %v1003
        %1005 = vmatprep.mubr.f32.mxu0 0.0
        %1006 = vmatmul.mubr.f32.gmra.mrb[0].mxu0 %v775
        %v1007 = vpop.f32.mrb[0].mxu0
        %v1008 = vadd.f32 %v826, %v1007
        %v1009 = vpop.f32.mrb[0].mxu0
        %v1010 = vadd.f32 %v830, %v1009
        %1011 = vmatprep.mubr.f32.mxu0 0.0
        %1012 = vmatmul.mubr.f32.gmra.mrb[0].mxu0 %v776
        %v1013 = vpop.f32.mrb[0].mxu0
        %v1014 = vadd.f32 %v826, %v1013
        %v1015 = vpop.f32.mrb[0].mxu0
        %v1016 = vadd.f32 %v830, %v1015
        %1017 = vmatprep.mubr.f32.mxu0 0.0
        %1018 = vmatmul.mubr.f32.gmra.mrb[0].mxu0 %v777
        %v1019 = vpop.f32.mrb[0].mxu0
        %v1020 = vadd.f32 %v826, %v1019
        %v1021 = vpop.f32.mrb[0].mxu0
        %v1022 = vadd.f32 %v830, %v1021
        %1023 = vmatprep.mubr.f32.mxu0 0.0
        %1024 = vmatmul.mubr.f32.gmra.mrb[0].mxu0 %v778
        %v1025 = vpop.f32.mrb[0].mxu0
        %v1026 = vadd.f32 %v826, %v1025
        %v1027 = vpop.f32.mrb[0].mxu0
        %v1028 = vadd.f32 %v830, %v1027
        %1029 = vmatprep.mubr.f32.mxu0 0.0
        %1030 = vmatmul.mubr.f32.gmra.mrb[0].mxu0 %v779
        %v1031 = vpop.f32.mrb[0].mxu0
        %v1032 = vadd.f32 %v826, %v1031
        %v1033 = vpop.f32.mrb[0].mxu0
        %v1034 = vadd.f32 %v830, %v1033
        %1035 = vmatprep.mubr.f32.mxu0 0.0
        %1036 = vmatmul.mubr.f32.gmra.mrb[0].mxu0 %v780
        %v1037 = vpop.f32.mrb[0].mxu0
        %v1038 = vadd.f32 %v826, %v1037
        %v1039 = vpop.f32.mrb[0].mxu0
        %v1040 = vadd.f32 %v830, %v1039
        %1041 = vmatprep.mubr.f32.mxu0 0.0
        %1042 = vmatmul.mubr.f32.gmra.mrb[0].mxu0 %v781
        %v1043 = vpop.f32.mrb[0].mxu0
        %v1044 = vadd.f32 %v826, %v1043
        %v1045 = vpop.f32.mrb[0].mxu0
        %v1046 = vadd.f32 %v830, %v1045
        %1047 = vmatprep.mubr.f32.mxu0 0.0
        %1048 = vmatmul.mubr.f32.gmra.mrb[0].mxu0 %v782
        %v1049 = vpop.f32.mrb[0].mxu0
        %v1050 = vadd.f32 %v826, %v1049
        %v1051 = vpop.f32.mrb[0].mxu0
        %v1052 = vadd.f32 %v830, %v1051
        %1053 = vmatprep.mubr.f32.mxu0 0.0
        %1054 = vmatmul.mubr.f32.gmra.mrb[0].mxu0 %v783
        %v1055 = vpop.f32.mrb[0].mxu0
        %v1056 = vadd.f32 %v826, %v1055
        %v1057 = vpop.f32.mrb[0].mxu0
        %v1058 = vadd.f32 %v830, %v1057
        %1059 = vmatprep.mubr.f32.mxu0 0.0
        %1060 = vmatmul.mubr.f32.gmra.mrb[0].mxu0 %v784
        %v1061 = vpop.f32.mrb[0].mxu0
        %v1062 = vadd.f32 %v826, %v1061
        %v1063 = vpop.f32.mrb[0].mxu0
        %v1064 = vadd.f32 %v830, %v1063
        %1065 = vmatprep.mubr.f32.mxu0 0.0
        %1066 = vmatmul.mubr.f32.gmra.mrb[0].mxu0 %v785
        %v1067 = vpop.f32.mrb[0].mxu0
        %v1068 = vadd.f32 %v826, %v1067
        %v1069 = vpop.f32.mrb[0].mxu0
        %v1070 = vadd.f32 %v830, %v1069
        %1071 = vmatprep.mubr.f32.mxu0 0.0
        %1072 = vmatmul.mubr.f32.gmra.mrb[0].mxu0 %v786
        %v1073 = vpop.f32.mrb[0].mxu0
        %v1074 = vadd.f32 %v826, %v1073
        %v1075 = vpop.f32.mrb[0].mxu0
        %v1076 = vadd.f32 %v830, %v1075
        %1077 = vmatprep.mubr.f32.mxu0 0.0
        %1078 = vmatmul.mubr.f32.gmra.mrb[0].mxu0 %v787
        %v1079 = vpop.f32.mrb[0].mxu0
        %v1080 = vadd.f32 %v826, %v1079
        %v1081 = vpop.f32.mrb[0].mxu0
        %v1082 = vadd.f32 %v830, %v1081
        %1083 = vmatprep.mubr.f32.mxu0 0.0
        %1084 = vmatmul.mubr.f32.gmra.mrb[0].mxu0 %v788
        %v1085 = vpop.f32.mrb[0].mxu0
        %v1086 = vadd.f32 %v826, %v1085
        %v1087 = vpop.f32.mrb[0].mxu0
        %v1088 = vadd.f32 %v830, %v1087
        %1089 = vdwg.mxu0
        %v1090 = vrsqrt.pop %v900
        %v1091 = vmul.f32 %v900, %v1090
        %vm1092 = vcmp.eq.f32.partialorder %v900, inf
        %v1093 = vsel %vm1092, %v900, %v1091
        %vm1094 = vcmp.eq.f32.partialorder %v900, 0.0
        %v1095 = vand.u32 %v900, 2147483648
        %v1096 = vsel %vm1094, %v1095, %v1093
        %v1097 = vrsqrt.pop %v902
        %v1098 = vmul.f32 %v902, %v1097
        %vm1099 = vcmp.eq.f32.partialorder %v902, inf
        %v1100 = vsel %vm1099, %v902, %v1098
        %vm1101 = vcmp.eq.f32.partialorder %v902, 0.0
        %v1102 = vand.u32 %v902, 2147483648
        %v1103 = vsel %vm1101, %v1102, %v1100
        %v1104 = vrsqrt.pop %v906
        %v1105 = vmul.f32 %v906, %v1104
        %vm1106 = vcmp.eq.f32.partialorder %v906, inf
        %v1107 = vsel %vm1106, %v906, %v1105
        %vm1108 = vcmp.eq.f32.partialorder %v906, 0.0
        %v1109 = vand.u32 %v906, 2147483648
        %v1110 = vsel %vm1108, %v1109, %v1107
        %v1111 = vrsqrt.pop %v908
        %v1112 = vmul.f32 %v908, %v1111
        %vm1113 = vcmp.eq.f32.partialorder %v908, inf
        %v1114 = vsel %vm1113, %v908, %v1112
        %vm1115 = vcmp.eq.f32.partialorder %v908, 0.0
        %v1116 = vand.u32 %v908, 2147483648
        %v1117 = vsel %vm1115, %v1116, %v1114
        %v1118 = vrsqrt.pop %v912
        %v1119 = vmul.f32 %v912, %v1118
        %vm1120 = vcmp.eq.f32.partialorder %v912, inf
        %v1121 = vsel %vm1120, %v912, %v1119
        %vm1122 = vcmp.eq.f32.partialorder %v912, 0.0
        %v1123 = vand.u32 %v912, 2147483648
        %v1124 = vsel %vm1122, %v1123, %v1121
        %v1125 = vrsqrt.pop %v914
        %v1126 = vmul.f32 %v914, %v1125
        %vm1127 = vcmp.eq.f32.partialorder %v914, inf
        %v1128 = vsel %vm1127, %v914, %v1126
        %vm1129 = vcmp.eq.f32.partialorder %v914, 0.0
        %v1130 = vand.u32 %v914, 2147483648
        %v1131 = vsel %vm1129, %v1130, %v1128
        %v1132 = vrsqrt.pop %v918
        %v1133 = vmul.f32 %v918, %v1132
        %vm1134 = vcmp.eq.f32.partialorder %v918, inf
        %v1135 = vsel %vm1134, %v918, %v1133
        %vm1136 = vcmp.eq.f32.partialorder %v918, 0.0
        %v1137 = vand.u32 %v918, 2147483648
        %v1138 = vsel %vm1136, %v1137, %v1135
        %v1139 = vrsqrt.pop %v920
        %v1140 = vmul.f32 %v920, %v1139
        %vm1141 = vcmp.eq.f32.partialorder %v920, inf
        %v1142 = vsel %vm1141, %v920, %v1140
        %vm1143 = vcmp.eq.f32.partialorder %v920, 0.0
        %v1144 = vand.u32 %v920, 2147483648
        %v1145 = vsel %vm1143, %v1144, %v1142
        %v1146 = vrsqrt.pop %v924
        %v1147 = vmul.f32 %v924, %v1146
        %vm1148 = vcmp.eq.f32.partialorder %v924, inf
        %v1149 = vsel %vm1148, %v924, %v1147
        %vm1150 = vcmp.eq.f32.partialorder %v924, 0.0
        %v1151 = vand.u32 %v924, 2147483648
        %v1152 = vsel %vm1150, %v1151, %v1149
        %v1153 = vrsqrt.pop %v926
        %v1154 = vmul.f32 %v926, %v1153
        %vm1155 = vcmp.eq.f32.partialorder %v926, inf
        %v1156 = vsel %vm1155, %v926, %v1154
        %vm1157 = vcmp.eq.f32.partialorder %v926, 0.0
        %v1158 = vand.u32 %v926, 2147483648
        %v1159 = vsel %vm1157, %v1158, %v1156
        %v1160 = vrsqrt.pop %v930
        %v1161 = vmul.f32 %v930, %v1160
        %vm1162 = vcmp.eq.f32.partialorder %v930, inf
        %v1163 = vsel %vm1162, %v930, %v1161
        %vm1164 = vcmp.eq.f32.partialorder %v930, 0.0
        %v1165 = vand.u32 %v930, 2147483648
        %v1166 = vsel %vm1164, %v1165, %v1163
        %v1167 = vrsqrt.pop %v932
        %v1168 = vmul.f32 %v932, %v1167
        %vm1169 = vcmp.eq.f32.partialorder %v932, inf
        %v1170 = vsel %vm1169, %v932, %v1168
        %vm1171 = vcmp.eq.f32.partialorder %v932, 0.0
        %v1172 = vand.u32 %v932, 2147483648
        %v1173 = vsel %vm1171, %v1172, %v1170
        %v1174 = vrsqrt.pop %v936
        %v1175 = vmul.f32 %v936, %v1174
        %vm1176 = vcmp.eq.f32.partialorder %v936, inf
        %v1177 = vsel %vm1176, %v936, %v1175
        %vm1178 = vcmp.eq.f32.partialorder %v936, 0.0
        %v1179 = vand.u32 %v936, 2147483648
        %v1180 = vsel %vm1178, %v1179, %v1177
        %v1181 = vrsqrt.pop %v938
        %v1182 = vmul.f32 %v938, %v1181
        %vm1183 = vcmp.eq.f32.partialorder %v938, inf
        %v1184 = vsel %vm1183, %v938, %v1182
        %vm1185 = vcmp.eq.f32.partialorder %v938, 0.0
        %v1186 = vand.u32 %v938, 2147483648
        %v1187 = vsel %vm1185, %v1186, %v1184
        %v1188 = vrsqrt.pop %v942
        %v1189 = vmul.f32 %v942, %v1188
        %vm1190 = vcmp.eq.f32.partialorder %v942, inf
        %v1191 = vsel %vm1190, %v942, %v1189
        %vm1192 = vcmp.eq.f32.partialorder %v942, 0.0
        %v1193 = vand.u32 %v942, 2147483648
        %v1194 = vsel %vm1192, %v1193, %v1191
        %v1195 = vrsqrt.pop %v944
        %v1196 = vmul.f32 %v944, %v1195
        %vm1197 = vcmp.eq.f32.partialorder %v944, inf
        %v1198 = vsel %vm1197, %v944, %v1196
        %vm1199 = vcmp.eq.f32.partialorder %v944, 0.0
        %v1200 = vand.u32 %v944, 2147483648
        %v1201 = vsel %vm1199, %v1200, %v1198
        %v1202 = vrsqrt.pop %v948
        %v1203 = vmul.f32 %v948, %v1202
        %vm1204 = vcmp.eq.f32.partialorder %v948, inf
        %v1205 = vsel %vm1204, %v948, %v1203
        %vm1206 = vcmp.eq.f32.partialorder %v948, 0.0
        %v1207 = vand.u32 %v948, 2147483648
        %v1208 = vsel %vm1206, %v1207, %v1205
        %v1209 = vrsqrt.pop %v950
        %v1210 = vmul.f32 %v950, %v1209
        %vm1211 = vcmp.eq.f32.partialorder %v950, inf
        %v1212 = vsel %vm1211, %v950, %v1210
        %vm1213 = vcmp.eq.f32.partialorder %v950, 0.0
        %v1214 = vand.u32 %v950, 2147483648
        %v1215 = vsel %vm1213, %v1214, %v1212
        %v1216 = vrsqrt.pop %v954
        %v1217 = vmul.f32 %v954, %v1216
        %vm1218 = vcmp.eq.f32.partialorder %v954, inf
        %v1219 = vsel %vm1218, %v954, %v1217
        %vm1220 = vcmp.eq.f32.partialorder %v954, 0.0
        %v1221 = vand.u32 %v954, 2147483648
        %v1222 = vsel %vm1220, %v1221, %v1219
        %v1223 = vrsqrt.pop %v956
        %v1224 = vmul.f32 %v956, %v1223
        %vm1225 = vcmp.eq.f32.partialorder %v956, inf
        %v1226 = vsel %vm1225, %v956, %v1224
        %vm1227 = vcmp.eq.f32.partialorder %v956, 0.0
        %v1228 = vand.u32 %v956, 2147483648
        %v1229 = vsel %vm1227, %v1228, %v1226
        %v1230 = vrsqrt.pop %v960
        %v1231 = vmul.f32 %v960, %v1230
        %vm1232 = vcmp.eq.f32.partialorder %v960, inf
        %v1233 = vsel %vm1232, %v960, %v1231
        %vm1234 = vcmp.eq.f32.partialorder %v960, 0.0
        %v1235 = vand.u32 %v960, 2147483648
        %v1236 = vsel %vm1234, %v1235, %v1233
        %v1237 = vrsqrt.pop %v962
        %v1238 = vmul.f32 %v962, %v1237
        %vm1239 = vcmp.eq.f32.partialorder %v962, inf
        %v1240 = vsel %vm1239, %v962, %v1238
        %vm1241 = vcmp.eq.f32.partialorder %v962, 0.0
        %v1242 = vand.u32 %v962, 2147483648
        %v1243 = vsel %vm1241, %v1242, %v1240
        %v1244 = vrsqrt.pop %v966
        %v1245 = vmul.f32 %v966, %v1244
        %vm1246 = vcmp.eq.f32.partialorder %v966, inf
        %v1247 = vsel %vm1246, %v966, %v1245
        %vm1248 = vcmp.eq.f32.partialorder %v966, 0.0
        %v1249 = vand.u32 %v966, 2147483648
        %v1250 = vsel %vm1248, %v1249, %v1247
        %v1251 = vrsqrt.pop %v968
        %v1252 = vmul.f32 %v968, %v1251
        %vm1253 = vcmp.eq.f32.partialorder %v968, inf
        %v1254 = vsel %vm1253, %v968, %v1252
        %vm1255 = vcmp.eq.f32.partialorder %v968, 0.0
        %v1256 = vand.u32 %v968, 2147483648
        %v1257 = vsel %vm1255, %v1256, %v1254
        %v1258 = vrsqrt.pop %v972
        %v1259 = vmul.f32 %v972, %v1258
        %vm1260 = vcmp.eq.f32.partialorder %v972, inf
        %v1261 = vsel %vm1260, %v972, %v1259
        %vm1262 = vcmp.eq.f32.partialorder %v972, 0.0
        %v1263 = vand.u32 %v972, 2147483648
        %v1264 = vsel %vm1262, %v1263, %v1261
        %v1265 = vrsqrt.pop %v974
        %v1266 = vmul.f32 %v974, %v1265
        %vm1267 = vcmp.eq.f32.partialorder %v974, inf
        %v1268 = vsel %vm1267, %v974, %v1266
        %vm1269 = vcmp.eq.f32.partialorder %v974, 0.0
        %v1270 = vand.u32 %v974, 2147483648
        %v1271 = vsel %vm1269, %v1270, %v1268
        %v1272 = vrsqrt.pop %v978
        %v1273 = vmul.f32 %v978, %v1272
        %vm1274 = vcmp.eq.f32.partialorder %v978, inf
        %v1275 = vsel %vm1274, %v978, %v1273
        %vm1276 = vcmp.eq.f32.partialorder %v978, 0.0
        %v1277 = vand.u32 %v978, 2147483648
        %v1278 = vsel %vm1276, %v1277, %v1275
        %v1279 = vrsqrt.pop %v980
        %v1280 = vmul.f32 %v980, %v1279
        %vm1281 = vcmp.eq.f32.partialorder %v980, inf
        %v1282 = vsel %vm1281, %v980, %v1280
        %vm1283 = vcmp.eq.f32.partialorder %v980, 0.0
        %v1284 = vand.u32 %v980, 2147483648
        %v1285 = vsel %vm1283, %v1284, %v1282
        %v1286 = vrsqrt.pop %v984
        %v1287 = vmul.f32 %v984, %v1286
        %vm1288 = vcmp.eq.f32.partialorder %v984, inf
        %v1289 = vsel %vm1288, %v984, %v1287
        %vm1290 = vcmp.eq.f32.partialorder %v984, 0.0
        %v1291 = vand.u32 %v984, 2147483648
        %v1292 = vsel %vm1290, %v1291, %v1289
        %v1293 = vrsqrt.pop %v986
        %v1294 = vmul.f32 %v986, %v1293
        %vm1295 = vcmp.eq.f32.partialorder %v986, inf
        %v1296 = vsel %vm1295, %v986, %v1294
        %vm1297 = vcmp.eq.f32.partialorder %v986, 0.0
        %v1298 = vand.u32 %v986, 2147483648
        %v1299 = vsel %vm1297, %v1298, %v1296
        %v1300 = vrsqrt.pop %v990
        %v1301 = vmul.f32 %v990, %v1300
        %vm1302 = vcmp.eq.f32.partialorder %v990, inf
        %v1303 = vsel %vm1302, %v990, %v1301
        %vm1304 = vcmp.eq.f32.partialorder %v990, 0.0
        %v1305 = vand.u32 %v990, 2147483648
        %v1306 = vsel %vm1304, %v1305, %v1303
        %v1307 = vrsqrt.pop %v992
        %v1308 = vmul.f32 %v992, %v1307
        %vm1309 = vcmp.eq.f32.partialorder %v992, inf
        %v1310 = vsel %vm1309, %v992, %v1308
        %vm1311 = vcmp.eq.f32.partialorder %v992, 0.0
        %v1312 = vand.u32 %v992, 2147483648
        %v1313 = vsel %vm1311, %v1312, %v1310
        %v1314 = vrsqrt.pop %v996
        %v1315 = vmul.f32 %v996, %v1314
        %vm1316 = vcmp.eq.f32.partialorder %v996, inf
        %v1317 = vsel %vm1316, %v996, %v1315
        %vm1318 = vcmp.eq.f32.partialorder %v996, 0.0
        %v1319 = vand.u32 %v996, 2147483648
        %v1320 = vsel %vm1318, %v1319, %v1317
        %v1321 = vrsqrt.pop %v998
        %v1322 = vmul.f32 %v998, %v1321
        %vm1323 = vcmp.eq.f32.partialorder %v998, inf
        %v1324 = vsel %vm1323, %v998, %v1322
        %vm1325 = vcmp.eq.f32.partialorder %v998, 0.0
        %v1326 = vand.u32 %v998, 2147483648
        %v1327 = vsel %vm1325, %v1326, %v1324
        %v1328 = vrsqrt.pop %v1002
        %v1329 = vmul.f32 %v1002, %v1328
        %vm1330 = vcmp.eq.f32.partialorder %v1002, inf
        %v1331 = vsel %vm1330, %v1002, %v1329
        %vm1332 = vcmp.eq.f32.partialorder %v1002, 0.0
        %v1333 = vand.u32 %v1002, 2147483648
        %v1334 = vsel %vm1332, %v1333, %v1331
        %v1335 = vrsqrt.pop %v1004
        %v1336 = vmul.f32 %v1004, %v1335
        %vm1337 = vcmp.eq.f32.partialorder %v1004, inf
        %v1338 = vsel %vm1337, %v1004, %v1336
        %vm1339 = vcmp.eq.f32.partialorder %v1004, 0.0
        %v1340 = vand.u32 %v1004, 2147483648
        %v1341 = vsel %vm1339, %v1340, %v1338
        %v1342 = vrsqrt.pop %v1008
        %v1343 = vmul.f32 %v1008, %v1342
        %vm1344 = vcmp.eq.f32.partialorder %v1008, inf
        %v1345 = vsel %vm1344, %v1008, %v1343
        %vm1346 = vcmp.eq.f32.partialorder %v1008, 0.0
        %v1347 = vand.u32 %v1008, 2147483648
        %v1348 = vsel %vm1346, %v1347, %v1345
        %v1349 = vrsqrt.pop %v1010
        %v1350 = vmul.f32 %v1010, %v1349
        %vm1351 = vcmp.eq.f32.partialorder %v1010, inf
        %v1352 = vsel %vm1351, %v1010, %v1350
        %vm1353 = vcmp.eq.f32.partialorder %v1010, 0.0
        %v1354 = vand.u32 %v1010, 2147483648
        %v1355 = vsel %vm1353, %v1354, %v1352
        %v1356 = vrsqrt.pop %v1014
        %v1357 = vmul.f32 %v1014, %v1356
        %vm1358 = vcmp.eq.f32.partialorder %v1014, inf
        %v1359 = vsel %vm1358, %v1014, %v1357
        %vm1360 = vcmp.eq.f32.partialorder %v1014, 0.0
        %v1361 = vand.u32 %v1014, 2147483648
        %v1362 = vsel %vm1360, %v1361, %v1359
        %v1363 = vrsqrt.pop %v1016
        %v1364 = vmul.f32 %v1016, %v1363
        %vm1365 = vcmp.eq.f32.partialorder %v1016, inf
        %v1366 = vsel %vm1365, %v1016, %v1364
        %vm1367 = vcmp.eq.f32.partialorder %v1016, 0.0
        %v1368 = vand.u32 %v1016, 2147483648
        %v1369 = vsel %vm1367, %v1368, %v1366
        %v1370 = vrsqrt.pop %v1020
        %v1371 = vmul.f32 %v1020, %v1370
        %vm1372 = vcmp.eq.f32.partialorder %v1020, inf
        %v1373 = vsel %vm1372, %v1020, %v1371
        %vm1374 = vcmp.eq.f32.partialorder %v1020, 0.0
        %v1375 = vand.u32 %v1020, 2147483648
        %v1376 = vsel %vm1374, %v1375, %v1373
        %v1377 = vrsqrt.pop %v1022
        %v1378 = vmul.f32 %v1022, %v1377
        %vm1379 = vcmp.eq.f32.partialorder %v1022, inf
        %v1380 = vsel %vm1379, %v1022, %v1378
        %vm1381 = vcmp.eq.f32.partialorder %v1022, 0.0
        %v1382 = vand.u32 %v1022, 2147483648
        %v1383 = vsel %vm1381, %v1382, %v1380
        %v1384 = vrsqrt.pop %v1026
        %v1385 = vmul.f32 %v1026, %v1384
        %vm1386 = vcmp.eq.f32.partialorder %v1026, inf
        %v1387 = vsel %vm1386, %v1026, %v1385
        %vm1388 = vcmp.eq.f32.partialorder %v1026, 0.0
        %v1389 = vand.u32 %v1026, 2147483648
        %v1390 = vsel %vm1388, %v1389, %v1387
        %v1391 = vrsqrt.pop %v1028
        %v1392 = vmul.f32 %v1028, %v1391
        %vm1393 = vcmp.eq.f32.partialorder %v1028, inf
        %v1394 = vsel %vm1393, %v1028, %v1392
        %vm1395 = vcmp.eq.f32.partialorder %v1028, 0.0
        %v1396 = vand.u32 %v1028, 2147483648
        %v1397 = vsel %vm1395, %v1396, %v1394
        %v1398 = vrsqrt.pop %v1032
        %v1399 = vmul.f32 %v1032, %v1398
        %vm1400 = vcmp.eq.f32.partialorder %v1032, inf
        %v1401 = vsel %vm1400, %v1032, %v1399
        %vm1402 = vcmp.eq.f32.partialorder %v1032, 0.0
        %v1403 = vand.u32 %v1032, 2147483648
        %v1404 = vsel %vm1402, %v1403, %v1401
        %v1405 = vrsqrt.pop %v1034
        %v1406 = vmul.f32 %v1034, %v1405
        %vm1407 = vcmp.eq.f32.partialorder %v1034, inf
        %v1408 = vsel %vm1407, %v1034, %v1406
        %vm1409 = vcmp.eq.f32.partialorder %v1034, 0.0
        %v1410 = vand.u32 %v1034, 2147483648
        %v1411 = vsel %vm1409, %v1410, %v1408
        %v1412 = vrsqrt.pop %v1038
        %v1413 = vmul.f32 %v1038, %v1412
        %vm1414 = vcmp.eq.f32.partialorder %v1038, inf
        %v1415 = vsel %vm1414, %v1038, %v1413
        %vm1416 = vcmp.eq.f32.partialorder %v1038, 0.0
        %v1417 = vand.u32 %v1038, 2147483648
        %v1418 = vsel %vm1416, %v1417, %v1415
        %v1419 = vrsqrt.pop %v1040
        %v1420 = vmul.f32 %v1040, %v1419
        %vm1421 = vcmp.eq.f32.partialorder %v1040, inf
        %v1422 = vsel %vm1421, %v1040, %v1420
        %vm1423 = vcmp.eq.f32.partialorder %v1040, 0.0
        %v1424 = vand.u32 %v1040, 2147483648
        %v1425 = vsel %vm1423, %v1424, %v1422
        %v1426 = vrsqrt.pop %v1044
        %v1427 = vmul.f32 %v1044, %v1426
        %vm1428 = vcmp.eq.f32.partialorder %v1044, inf
        %v1429 = vsel %vm1428, %v1044, %v1427
        %vm1430 = vcmp.eq.f32.partialorder %v1044, 0.0
        %v1431 = vand.u32 %v1044, 2147483648
        %v1432 = vsel %vm1430, %v1431, %v1429
        %v1433 = vrsqrt.pop %v1046
        %v1434 = vmul.f32 %v1046, %v1433
        %vm1435 = vcmp.eq.f32.partialorder %v1046, inf
        %v1436 = vsel %vm1435, %v1046, %v1434
        %vm1437 = vcmp.eq.f32.partialorder %v1046, 0.0
        %v1438 = vand.u32 %v1046, 2147483648
        %v1439 = vsel %vm1437, %v1438, %v1436
        %v1440 = vrsqrt.pop %v1050
        %v1441 = vmul.f32 %v1050, %v1440
        %vm1442 = vcmp.eq.f32.partialorder %v1050, inf
        %v1443 = vsel %vm1442, %v1050, %v1441
        %vm1444 = vcmp.eq.f32.partialorder %v1050, 0.0
        %v1445 = vand.u32 %v1050, 2147483648
        %v1446 = vsel %vm1444, %v1445, %v1443
        %v1447 = vrsqrt.pop %v1052
        %v1448 = vmul.f32 %v1052, %v1447
        %vm1449 = vcmp.eq.f32.partialorder %v1052, inf
        %v1450 = vsel %vm1449, %v1052, %v1448
        %vm1451 = vcmp.eq.f32.partialorder %v1052, 0.0
        %v1452 = vand.u32 %v1052, 2147483648
        %v1453 = vsel %vm1451, %v1452, %v1450
        %v1454 = vrsqrt.pop %v1056
        %v1455 = vmul.f32 %v1056, %v1454
        %vm1456 = vcmp.eq.f32.partialorder %v1056, inf
        %v1457 = vsel %vm1456, %v1056, %v1455
        %vm1458 = vcmp.eq.f32.partialorder %v1056, 0.0
        %v1459 = vand.u32 %v1056, 2147483648
        %v1460 = vsel %vm1458, %v1459, %v1457
        %v1461 = vrsqrt.pop %v1058
        %v1462 = vmul.f32 %v1058, %v1461
        %vm1463 = vcmp.eq.f32.partialorder %v1058, inf
        %v1464 = vsel %vm1463, %v1058, %v1462
        %vm1465 = vcmp.eq.f32.partialorder %v1058, 0.0
        %v1466 = vand.u32 %v1058, 2147483648
        %v1467 = vsel %vm1465, %v1466, %v1464
        %v1468 = vrsqrt.pop %v1062
        %v1469 = vmul.f32 %v1062, %v1468
        %vm1470 = vcmp.eq.f32.partialorder %v1062, inf
        %v1471 = vsel %vm1470, %v1062, %v1469
        %vm1472 = vcmp.eq.f32.partialorder %v1062, 0.0
        %v1473 = vand.u32 %v1062, 2147483648
        %v1474 = vsel %vm1472, %v1473, %v1471
        %v1475 = vrsqrt.pop %v1064
        %v1476 = vmul.f32 %v1064, %v1475
        %vm1477 = vcmp.eq.f32.partialorder %v1064, inf
        %v1478 = vsel %vm1477, %v1064, %v1476
        %vm1479 = vcmp.eq.f32.partialorder %v1064, 0.0
        %v1480 = vand.u32 %v1064, 2147483648
        %v1481 = vsel %vm1479, %v1480, %v1478
        %v1482 = vrsqrt.pop %v1068
        %v1483 = vmul.f32 %v1068, %v1482
        %vm1484 = vcmp.eq.f32.partialorder %v1068, inf
        %v1485 = vsel %vm1484, %v1068, %v1483
        %vm1486 = vcmp.eq.f32.partialorder %v1068, 0.0
        %v1487 = vand.u32 %v1068, 2147483648
        %v1488 = vsel %vm1486, %v1487, %v1485
        %v1489 = vrsqrt.pop %v1070
        %v1490 = vmul.f32 %v1070, %v1489
        %vm1491 = vcmp.eq.f32.partialorder %v1070, inf
        %v1492 = vsel %vm1491, %v1070, %v1490
        %vm1493 = vcmp.eq.f32.partialorder %v1070, 0.0
        %v1494 = vand.u32 %v1070, 2147483648
        %v1495 = vsel %vm1493, %v1494, %v1492
        %v1496 = vrsqrt.pop %v1074
        %v1497 = vmul.f32 %v1074, %v1496
        %vm1498 = vcmp.eq.f32.partialorder %v1074, inf
        %v1499 = vsel %vm1498, %v1074, %v1497
        %vm1500 = vcmp.eq.f32.partialorder %v1074, 0.0
        %v1501 = vand.u32 %v1074, 2147483648
        %v1502 = vsel %vm1500, %v1501, %v1499
        %v1503 = vrsqrt.pop %v1076
        %v1504 = vmul.f32 %v1076, %v1503
        %vm1505 = vcmp.eq.f32.partialorder %v1076, inf
        %v1506 = vsel %vm1505, %v1076, %v1504
        %vm1507 = vcmp.eq.f32.partialorder %v1076, 0.0
        %v1508 = vand.u32 %v1076, 2147483648
        %v1509 = vsel %vm1507, %v1508, %v1506
        %v1510 = vrsqrt.pop %v1080
        %v1511 = vmul.f32 %v1080, %v1510
        %vm1512 = vcmp.eq.f32.partialorder %v1080, inf
        %v1513 = vsel %vm1512, %v1080, %v1511
        %vm1514 = vcmp.eq.f32.partialorder %v1080, 0.0
        %v1515 = vand.u32 %v1080, 2147483648
        %v1516 = vsel %vm1514, %v1515, %v1513
        %v1517 = vrsqrt.pop %v1082
        %v1518 = vmul.f32 %v1082, %v1517
        %vm1519 = vcmp.eq.f32.partialorder %v1082, inf
        %v1520 = vsel %vm1519, %v1082, %v1518
        %vm1521 = vcmp.eq.f32.partialorder %v1082, 0.0
        %v1522 = vand.u32 %v1082, 2147483648
        %v1523 = vsel %vm1521, %v1522, %v1520
        %v1524 = vrsqrt.pop %v1086
        %v1525 = vmul.f32 %v1086, %v1524
        %vm1526 = vcmp.eq.f32.partialorder %v1086, inf
        %v1527 = vsel %vm1526, %v1086, %v1525
        %vm1528 = vcmp.eq.f32.partialorder %v1086, 0.0
        %v1529 = vand.u32 %v1086, 2147483648
        %v1530 = vsel %vm1528, %v1529, %v1527
        %v1531 = vrsqrt.pop %v1088
        %v1532 = vmul.f32 %v1088, %v1531
        %vm1533 = vcmp.eq.f32.partialorder %v1088, inf
        %v1534 = vsel %vm1533, %v1088, %v1532
        %vm1535 = vcmp.eq.f32.partialorder %v1088, 0.0
        %v1536 = vand.u32 %v1088, 2147483648
        %v1537 = vsel %vm1535, %v1536, %v1534
        %v1538 = vld [vmem:[%s381] sm:$0xff]
        %v1539 = vld [vmem:[%s381 + $0x8] sm:$0xff]
        %v1540 = vld [vmem:[%s381 + $0x10] sm:$0xff]
        %v1541 = vld [vmem:[%s381 + $0x18] sm:$0xff]
        %v1542 = vld [vmem:[%s381 + $0x20] sm:$0xff]
        %v1543 = vld [vmem:[%s381 + $0x28] sm:$0xff]
        %v1544 = vld [vmem:[%s381 + $0x30] sm:$0xff]
        %v1545 = vld [vmem:[%s381 + $0x38] sm:$0xff]
        %v1546 = vld [vmem:[%s381 + $0x40] sm:$0xff]
        %v1547 = vld [vmem:[%s381 + $0x48] sm:$0xff]
        %v1548 = vld [vmem:[%s381 + $0x50] sm:$0xff]
        %v1549 = vld [vmem:[%s381 + $0x58] sm:$0xff]
        %v1550 = vld [vmem:[%s381 + $0x60] sm:$0xff]
        %v1551 = vld [vmem:[%s381 + $0x68] sm:$0xff]
        %v1552 = vld [vmem:[%s381 + $0x70] sm:$0xff]
        %v1553 = vld [vmem:[%s381 + $0x78] sm:$0xff]
        %v1554 = vld [vmem:[%s381 + $0x80] sm:$0xff]
        %v1555 = vld [vmem:[%s381 + $0x88] sm:$0xff]
        %v1556 = vld [vmem:[%s381 + $0x90] sm:$0xff]
        %v1557 = vld [vmem:[%s381 + $0x98] sm:$0xff]
        %v1558 = vld [vmem:[%s381 + $0xa0] sm:$0xff]
        %v1559 = vld [vmem:[%s381 + $0xa8] sm:$0xff]
        %v1560 = vld [vmem:[%s381 + $0xb0] sm:$0xff]
        %v1561 = vld [vmem:[%s381 + $0xb8] sm:$0xff]
        %v1562 = vld [vmem:[%s381 + $0xc0] sm:$0xff]
        %v1563 = vld [vmem:[%s381 + $0xc8] sm:$0xff]
        %v1564 = vld [vmem:[%s381 + $0xd0] sm:$0xff]
        %v1565 = vld [vmem:[%s381 + $0xd8] sm:$0xff]
        %v1566 = vld [vmem:[%s381 + $0xe0] sm:$0xff]
        %v1567 = vld [vmem:[%s381 + $0xe8] sm:$0xff]
        %v1568 = vld [vmem:[%s381 + $0xf0] sm:$0xff]
        %v1569 = vld [vmem:[%s381 + $0xf8] sm:$0xff]
        %v1570 = vld [vmem:[%s381 + $0x100] sm:$0xff]
        %v1571 = vld [vmem:[%s381 + $0x108] sm:$0xff]
        %v1572 = vld [vmem:[%s381 + $0x110] sm:$0xff]
        %v1573 = vld [vmem:[%s381 + $0x118] sm:$0xff]
        %v1574 = vld [vmem:[%s381 + $0x120] sm:$0xff]
        %v1575 = vld [vmem:[%s381 + $0x128] sm:$0xff]
        %v1576 = vld [vmem:[%s381 + $0x130] sm:$0xff]
        %v1577 = vld [vmem:[%s381 + $0x138] sm:$0xff]
        %v1578 = vld [vmem:[%s381 + $0x140] sm:$0xff]
        %v1579 = vld [vmem:[%s381 + $0x148] sm:$0xff]
        %v1580 = vld [vmem:[%s381 + $0x150] sm:$0xff]
        %v1581 = vld [vmem:[%s381 + $0x158] sm:$0xff]
        %v1582 = vld [vmem:[%s381 + $0x160] sm:$0xff]
        %v1583 = vld [vmem:[%s381 + $0x168] sm:$0xff]
        %v1584 = vld [vmem:[%s381 + $0x170] sm:$0xff]
        %v1585 = vld [vmem:[%s381 + $0x178] sm:$0xff]
        %v1586 = vld [vmem:[%s381 + $0x180] sm:$0xff]
        %v1587 = vld [vmem:[%s381 + $0x188] sm:$0xff]
        %v1588 = vld [vmem:[%s381 + $0x190] sm:$0xff]
        %v1589 = vld [vmem:[%s381 + $0x198] sm:$0xff]
        %v1590 = vld [vmem:[%s381 + $0x1a0] sm:$0xff]
        %v1591 = vld [vmem:[%s381 + $0x1a8] sm:$0xff]
        %v1592 = vld [vmem:[%s381 + $0x1b0] sm:$0xff]
        %v1593 = vld [vmem:[%s381 + $0x1b8] sm:$0xff]
        %v1594 = vld [vmem:[%s381 + $0x1c0] sm:$0xff]
        %v1595 = vld [vmem:[%s381 + $0x1c8] sm:$0xff]
        %v1596 = vld [vmem:[%s381 + $0x1d0] sm:$0xff]
        %v1597 = vld [vmem:[%s381 + $0x1d8] sm:$0xff]
        %v1598 = vld [vmem:[%s381 + $0x1e0] sm:$0xff]
        %v1599 = vld [vmem:[%s381 + $0x1e8] sm:$0xff]
        %v1600 = vld [vmem:[%s381 + $0x1f0] sm:$0xff]
        %v1601 = vld [vmem:[%s381 + $0x1f8] sm:$0xff]
        %v1602 = vmul.f32 %v1096, %v1538
        %v1603 = vmul.f32 %v1103, %v1539
        %v1604 = vmul.f32 %v1110, %v1540
        %v1605 = vmul.f32 %v1117, %v1541
        %v1606 = vmul.f32 %v1124, %v1542
        %v1607 = vmul.f32 %v1131, %v1543
        %v1608 = vmul.f32 %v1138, %v1544
        %v1609 = vmul.f32 %v1145, %v1545
        %v1610 = vmul.f32 %v1152, %v1546
        %v1611 = vmul.f32 %v1159, %v1547
        %v1612 = vmul.f32 %v1166, %v1548
        %v1613 = vmul.f32 %v1173, %v1549
        %v1614 = vmul.f32 %v1180, %v1550
        %v1615 = vmul.f32 %v1187, %v1551
        %v1616 = vmul.f32 %v1194, %v1552
        %v1617 = vmul.f32 %v1201, %v1553
        %v1618 = vmul.f32 %v1208, %v1554
        %v1619 = vmul.f32 %v1215, %v1555
        %v1620 = vmul.f32 %v1222, %v1556
        %v1621 = vmul.f32 %v1229, %v1557
        %v1622 = vmul.f32 %v1236, %v1558
        %v1623 = vmul.f32 %v1243, %v1559
        %v1624 = vmul.f32 %v1250, %v1560
        %v1625 = vmul.f32 %v1257, %v1561
        %v1626 = vmul.f32 %v1264, %v1562
        %v1627 = vmul.f32 %v1271, %v1563
        %v1628 = vmul.f32 %v1278, %v1564
        %v1629 = vmul.f32 %v1285, %v1565
        %v1630 = vmul.f32 %v1292, %v1566
        %v1631 = vmul.f32 %v1299, %v1567
        %v1632 = vmul.f32 %v1306, %v1568
        %v1633 = vmul.f32 %v1313, %v1569
        %v1634 = vmul.f32 %v1320, %v1570
        %v1635 = vmul.f32 %v1327, %v1571
        %v1636 = vmul.f32 %v1334, %v1572
        %v1637 = vmul.f32 %v1341, %v1573
        %v1638 = vmul.f32 %v1348, %v1574
        %v1639 = vmul.f32 %v1355, %v1575
        %v1640 = vmul.f32 %v1362, %v1576
        %v1641 = vmul.f32 %v1369, %v1577
        %v1642 = vmul.f32 %v1376, %v1578
        %v1643 = vmul.f32 %v1383, %v1579
        %v1644 = vmul.f32 %v1390, %v1580
        %v1645 = vmul.f32 %v1397, %v1581
        %v1646 = vmul.f32 %v1404, %v1582
        %v1647 = vmul.f32 %v1411, %v1583
        %v1648 = vmul.f32 %v1418, %v1584
        %v1649 = vmul.f32 %v1425, %v1585
        %v1650 = vmul.f32 %v1432, %v1586
        %v1651 = vmul.f32 %v1439, %v1587
        %v1652 = vmul.f32 %v1446, %v1588
        %v1653 = vmul.f32 %v1453, %v1589
        %v1654 = vmul.f32 %v1460, %v1590
        %v1655 = vmul.f32 %v1467, %v1591
        %v1656 = vmul.f32 %v1474, %v1592
        %v1657 = vmul.f32 %v1481, %v1593
        %v1658 = vmul.f32 %v1488, %v1594
        %v1659 = vmul.f32 %v1495, %v1595
        %v1660 = vmul.f32 %v1502, %v1596
        %v1661 = vmul.f32 %v1509, %v1597
        %v1662 = vmul.f32 %v1516, %v1598
        %v1663 = vmul.f32 %v1523, %v1599
        %v1664 = vmul.f32 %v1530, %v1600
        %v1665 = vmul.f32 %v1537, %v1601
        %v1666 = vadd.f32 %v567, %v1602
        %v1667 = vadd.f32 %v569, %v1603
        %v1668 = vadd.f32 %v573, %v1604
        %v1669 = vadd.f32 %v575, %v1605
        %v1670 = vadd.f32 %v579, %v1606
        %v1671 = vadd.f32 %v581, %v1607
        %v1672 = vadd.f32 %v585, %v1608
        %v1673 = vadd.f32 %v587, %v1609
        %v1674 = vadd.f32 %v591, %v1610
        %v1675 = vadd.f32 %v593, %v1611
        %v1676 = vadd.f32 %v597, %v1612
        %v1677 = vadd.f32 %v599, %v1613
        %v1678 = vadd.f32 %v603, %v1614
        %v1679 = vadd.f32 %v605, %v1615
        %v1680 = vadd.f32 %v609, %v1616
        %v1681 = vadd.f32 %v611, %v1617
        %v1682 = vadd.f32 %v615, %v1618
        %v1683 = vadd.f32 %v617, %v1619
        %v1684 = vadd.f32 %v621, %v1620
        %v1685 = vadd.f32 %v623, %v1621
        %v1686 = vadd.f32 %v627, %v1622
        %v1687 = vadd.f32 %v629, %v1623
        %v1688 = vadd.f32 %v633, %v1624
        %v1689 = vadd.f32 %v635, %v1625
        %v1690 = vadd.f32 %v639, %v1626
        %v1691 = vadd.f32 %v641, %v1627
        %v1692 = vadd.f32 %v645, %v1628
        %v1693 = vadd.f32 %v647, %v1629
        %v1694 = vadd.f32 %v651, %v1630
        %v1695 = vadd.f32 %v653, %v1631
        %v1696 = vadd.f32 %v657, %v1632
        %v1697 = vadd.f32 %v659, %v1633
        %v1698 = vadd.f32 %v663, %v1634
        %v1699 = vadd.f32 %v665, %v1635
        %v1700 = vadd.f32 %v669, %v1636
        %v1701 = vadd.f32 %v671, %v1637
        %v1702 = vadd.f32 %v675, %v1638
        %v1703 = vadd.f32 %v677, %v1639
        %v1704 = vadd.f32 %v681, %v1640
        %v1705 = vadd.f32 %v683, %v1641
        %v1706 = vadd.f32 %v687, %v1642
        %v1707 = vadd.f32 %v689, %v1643
        %v1708 = vadd.f32 %v693, %v1644
        %v1709 = vadd.f32 %v695, %v1645
        %v1710 = vadd.f32 %v699, %v1646
        %v1711 = vadd.f32 %v701, %v1647
        %v1712 = vadd.f32 %v705, %v1648
        %v1713 = vadd.f32 %v707, %v1649
        %v1714 = vadd.f32 %v711, %v1650
        %v1715 = vadd.f32 %v713, %v1651
        %v1716 = vadd.f32 %v717, %v1652
        %v1717 = vadd.f32 %v719, %v1653
        %v1718 = vadd.f32 %v723, %v1654
        %v1719 = vadd.f32 %v725, %v1655
        %v1720 = vadd.f32 %v729, %v1656
        %v1721 = vadd.f32 %v731, %v1657
        %v1722 = vadd.f32 %v735, %v1658
        %v1723 = vadd.f32 %v737, %v1659
        %v1724 = vadd.f32 %v741, %v1660
        %v1725 = vadd.f32 %v743, %v1661
        %v1726 = vadd.f32 %v747, %v1662
        %v1727 = vadd.f32 %v749, %v1663
        %v1728 = vadd.f32 %v753, %v1664
        %v1729 = vadd.f32 %v755, %v1665
        %1730 = vst [vmem:[%s414] sm:$0xff] %v1666
        %1731 = vst [vmem:[%s414 + $0x8] sm:$0xff] %v1667
        %1732 = vst [vmem:[%s414 + $0x10] sm:$0xff] %v1668
        %1733 = vst [vmem:[%s414 + $0x18] sm:$0xff] %v1669
        %1734 = vst [vmem:[%s414 + $0x20] sm:$0xff] %v1670
        %1735 = vst [vmem:[%s414 + $0x28] sm:$0xff] %v1671
        %1736 = vst [vmem:[%s414 + $0x30] sm:$0xff] %v1672
        %1737 = vst [vmem:[%s414 + $0x38] sm:$0xff] %v1673
        %1738 = vst [vmem:[%s414 + $0x40] sm:$0xff] %v1674
        %1739 = vst [vmem:[%s414 + $0x48] sm:$0xff] %v1675
        %1740 = vst [vmem:[%s414 + $0x50] sm:$0xff] %v1676
        %1741 = vst [vmem:[%s414 + $0x58] sm:$0xff] %v1677
        %1742 = vst [vmem:[%s414 + $0x60] sm:$0xff] %v1678
        %1743 = vst [vmem:[%s414 + $0x68] sm:$0xff] %v1679
        %1744 = vst [vmem:[%s414 + $0x70] sm:$0xff] %v1680
        %1745 = vst [vmem:[%s414 + $0x78] sm:$0xff] %v1681
        %1746 = vst [vmem:[%s414 + $0x80] sm:$0xff] %v1682
        %1747 = vst [vmem:[%s414 + $0x88] sm:$0xff] %v1683
        %1748 = vst [vmem:[%s414 + $0x90] sm:$0xff] %v1684
        %1749 = vst [vmem:[%s414 + $0x98] sm:$0xff] %v1685
        %1750 = vst [vmem:[%s414 + $0xa0] sm:$0xff] %v1686
        %1751 = vst [vmem:[%s414 + $0xa8] sm:$0xff] %v1687
        %1752 = vst [vmem:[%s414 + $0xb0] sm:$0xff] %v1688
        %1753 = vst [vmem:[%s414 + $0xb8] sm:$0xff] %v1689
        %1754 = vst [vmem:[%s414 + $0xc0] sm:$0xff] %v1690
        %1755 = vst [vmem:[%s414 + $0xc8] sm:$0xff] %v1691
        %1756 = vst [vmem:[%s414 + $0xd0] sm:$0xff] %v1692
        %1757 = vst [vmem:[%s414 + $0xd8] sm:$0xff] %v1693
        %1758 = vst [vmem:[%s414 + $0xe0] sm:$0xff] %v1694
        %1759 = vst [vmem:[%s414 + $0xe8] sm:$0xff] %v1695
        %1760 = vst [vmem:[%s414 + $0xf0] sm:$0xff] %v1696
        %1761 = vst [vmem:[%s414 + $0xf8] sm:$0xff] %v1697
        %1762 = vst [vmem:[%s414 + $0x100] sm:$0xff] %v1698
        %1763 = vst [vmem:[%s414 + $0x108] sm:$0xff] %v1699
        %1764 = vst [vmem:[%s414 + $0x110] sm:$0xff] %v1700
        %1765 = vst [vmem:[%s414 + $0x118] sm:$0xff] %v1701
        %1766 = vst [vmem:[%s414 + $0x120] sm:$0xff] %v1702
        %1767 = vst [vmem:[%s414 + $0x128] sm:$0xff] %v1703
        %1768 = vst [vmem:[%s414 + $0x130] sm:$0xff] %v1704
        %1769 = vst [vmem:[%s414 + $0x138] sm:$0xff] %v1705
        %1770 = vst [vmem:[%s414 + $0x140] sm:$0xff] %v1706
        %1771 = vst [vmem:[%s414 + $0x148] sm:$0xff] %v1707
        %1772 = vst [vmem:[%s414 + $0x150] sm:$0xff] %v1708
        %1773 = vst [vmem:[%s414 + $0x158] sm:$0xff] %v1709
        %1774 = vst [vmem:[%s414 + $0x160] sm:$0xff] %v1710
        %1775 = vst [vmem:[%s414 + $0x168] sm:$0xff] %v1711
        %1776 = vst [vmem:[%s414 + $0x170] sm:$0xff] %v1712
        %1777 = vst [vmem:[%s414 + $0x178] sm:$0xff] %v1713
        %1778 = vst [vmem:[%s414 + $0x180] sm:$0xff] %v1714
        %1779 = vst [vmem:[%s414 + $0x188] sm:$0xff] %v1715
        %1780 = vst [vmem:[%s414 + $0x190] sm:$0xff] %v1716
        %1781 = vst [vmem:[%s414 + $0x198] sm:$0xff] %v1717
        %1782 = vst [vmem:[%s414 + $0x1a0] sm:$0xff] %v1718
        %1783 = vst [vmem:[%s414 + $0x1a8] sm:$0xff] %v1719
        %1784 = vst [vmem:[%s414 + $0x1b0] sm:$0xff] %v1720
        %1785 = vst [vmem:[%s414 + $0x1b8] sm:$0xff] %v1721
        %1786 = vst [vmem:[%s414 + $0x1c0] sm:$0xff] %v1722
        %1787 = vst [vmem:[%s414 + $0x1c8] sm:$0xff] %v1723
        %1788 = vst [vmem:[%s414 + $0x1d0] sm:$0xff] %v1724
        %1789 = vst [vmem:[%s414 + $0x1d8] sm:$0xff] %v1725
        %1790 = vst [vmem:[%s414 + $0x1e0] sm:$0xff] %v1726
        %1791 = vst [vmem:[%s414 + $0x1e8] sm:$0xff] %v1727
        %1792 = vst [vmem:[%s414 + $0x1f0] sm:$0xff] %v1728
        %1793 = vst [vmem:[%s414 + $0x1f8] sm:$0xff] %v1729
        %s1794 = sand.u32 %s208, 1
        %s1795 = scalar_lea.sflag [#allocation4], %s1794
        %s1796 = sand.u32 %s208, 1
        %s1797 = smul.addr %s1796, 512
        %s1798 = scalar_lea.vmem [#allocation13], %s1797
        // Predicated region
        $region69: #{tpu_custom_call.1} parent=43 // pred_check
          %p1799 = pneg %p218
        $region70: #{tpu_custom_call.1} parent=43 // pred_check_branch
          %1801 = sbr.rel (%p1799) target = $region72
        $region71: #{tpu_custom_call.1} parent=43 // pred_region
          %s1802 = smul.u32 32, %s33
          %s1803 = smul.u32 2, %s32
          %s1805 = ssub.s32 8192, 8192
          %1806 = vsyncadd %s1795, %s1805
          %s1807 = smul.addr %s1802, 2
          %s1808 = sadd.s32 %s1803, %s1807
          %s1809 = smul.addr %s1808, 128
          %s1810 = scalar_lea.hbm %s6, %s1809
          %s1811 = sshll.u32 %s1798, 4
          %s1812 = int_to_ptr.vmem [resolvable:$true] %s1811
          %1817 = dma.vmem_to_hbm [thread:$0]  %s1812, 8192, %s1810, %s1795, 256, 256, 16
        $region72: #{tpu_custom_call.1} parent=43 // pred_fallthru
          _
      $region44: #{tpu_custom_call.1} parent=5 // pred_fallthru
        _
      %p1818 = scmp.le.s32.totalorder 2, %s23
      // Predicated region
      $region73: #{tpu_custom_call.1} parent=5 // pred_check
        %p1819 = pneg %p1818
      $region74: #{tpu_custom_call.1} parent=5 // pred_check_branch
        %1821 = sbr.rel (%p1819) target = $region76
      $region75: #{tpu_custom_call.1} parent=5 // pred_region
        %s1822 = ssub.s32 %s23, 2
        // Predicated region
        $region77: #{tpu_custom_call.1} parent=75 // pred_check
          %p1823 = pneg %p224
        $region78: #{tpu_custom_call.1} parent=75 // pred_check_branch
          %1825 = sbr.rel (%p1823) target = $region80
        $region79: #{tpu_custom_call.1} parent=75 // pred_region
          %s1826 = sand.u32 %s209, 1
          %s1827 = scalar_lea.sflag [#allocation4], %s1826
          %s1828 = sand.u32 %s209, 1
          %s1829 = smul.addr %s1828, 512
          %s1830 = scalar_lea.vmem [#allocation13], %s1829
          %1831 = dma.done %s1827, 8192
        $region80: #{tpu_custom_call.1} parent=75 // pred_fallthru
          _
      $region76: #{tpu_custom_call.1} parent=5 // pred_fallthru
        _
    $region6: #{tpu_custom_call.1} parent=1 // loop_footer
      %s27 = sadd.s32 1, %s23
    $region7: #{tpu_custom_call.1} parent=1 // loop_footer_branch
      %22 = sbr.rel target = $region3
    $region8: #{tpu_custom_call.1} parent=1 // loop_exit
      _
    %1832 = vsyncpa [#allocation3], 1
    %s1833 = scalar_lea.sflag [#allocation3], 1
    %1834 = vsyncpa %s1833, 1
    %1835 = vsyncpa [#allocation6], 1
    %1836 = vsyncpa [#allocation9], 1
    %1837 = vsyncpa [#allocation12], 1
    %s1838 = scalar_lea.sflag [#allocation12], 1
    %1839 = vsyncpa %s1838, 1
    %1840 = vsyncpa [#allocation4], 1
    %s1841 = scalar_lea.sflag [#allocation4], 1
    %1842 = vsyncpa %s1841, 1

</llo_original>
